<compile_context>
chip_gen: v5e
topology: v5e:2x2
jax: 0.10.0
libtpu: 0.0.40
codegen_flags: <defaults>
</compile_context>

<pallas_src>
import jax
import jax.numpy as jnp
from jax.experimental import pallas as pl
from jax.experimental.pallas import tpu as pltpu

_LANE = 128
_SUBLANE_BY_ITEMSIZE = {4: 8, 2: 16, 1: 32}
# Total double-buffered VMEM budget (2 in + 2 out padded tiles).  8 MiB keeps
# headroom under v5e's 16 MiB default scoped-VMEM limit and is already past
# the bandwidth knee on v6e/v7x for a mem-bound copy kernel.
_VMEM_BUDGET_BYTES = 8 * 1024 * 1024

# Configs for which the lane-dense relayout failed to lower (avoid retrying
# the failing compile on every call).
_LANE_DENSE_UNSUPPORTED = set()


def _ceil_to(a, b):
    return -(-a // b) * b


def _divisors_desc(n):
    return [d for d in range(n, 0, -1) if n % d == 0]


def _choose_tiling(n, c, hw, itemsize, allow_lane_dense=True):
    """Returns (nb, hw_tile, lane_dense)."""
    sub = _SUBLANE_BY_ITEMSIZE.get(itemsize, 8)

    # --- HW tile: whole axis when <= 1024 lanes, else largest 128-multiple
    #     divisor <= 1024.  If no clean divisor exists, keep the whole axis and
    #     let NB shrink instead. ---
    hw_tile = hw
    if hw > 1024 and hw % _LANE == 0:
        t = 1024
        while t >= _LANE:
            if hw % t == 0:
                hw_tile = t
                break
            t -= _LANE

    def lane_dense_ok(tile):
        # C already a multiple of 128 -> plain (.., tile, C) stores are
        # unmasked; no need for the interleaved slab (or its relayout).
        if not allow_lane_dense or c % _LANE == 0:
            return False
        # Output block's last dim must be 128-aligned or cover the full axis.
        return (tile * c) % _LANE == 0 or tile == hw

    def footprint(nb, tile, lane_dense):
        # Padded, double-buffered VMEM bytes for 2 input + 2 output tiles.
        in_b = nb * _ceil_to(c, sub) * _ceil_to(tile, _LANE) * itemsize
        if lane_dense:
            out_b = _ceil_to(nb, 8) * _ceil_to(tile * c, _LANE) * itemsize
        else:
            out_b = nb * _ceil_to(tile, sub) * _ceil_to(c, _LANE) * itemsize
        return 2 * (in_b + out_b)

    def pick_nb(lane_dense):
        for d in _divisors_desc(n):
            # Lane-dense output block is 2-D: its second-to-last dim (NB) must
            # be a multiple of 8 or cover the full batch axis.
            if lane_dense and not (d == n or d % 8 == 0):
                continue
            if footprint(d, hw_tile, lane_dense) <= _VMEM_BUDGET_BYTES:
                return d
        return None

    lane_dense = lane_dense_ok(hw_tile)
    nb = pick_nb(lane_dense) if lane_dense else None
    if nb is None:
        lane_dense = False
        nb = pick_nb(False) or 1

    # v7x has 2 TensorCores: keep >= 2 steps on a "parallel" grid axis when the
    # shape allows it (harmless on the single-TC v5e/v6e).
    if (n // nb) * (hw // hw_tile) == 1:
        half_nb = nb // 2
        if nb % 2 == 0 and (not lane_dense or half_nb % 8 == 0):
            nb = half_nb
        elif hw_tile % (2 * _LANE) == 0 and (
                not lane_dense or lane_dense_ok(hw_tile // 2)):
            hw_tile //= 2

    return nb, hw_tile, lane_dense


def _flatten_lane_dense_kernel(x_ref, o_ref):
    # x_ref: (NB, C, T) ; o_ref: (NB, T*C)   with  o[i, t*C + c] = x[i, c, t]
    # The transpose runs on the XLU (vector-extended slot, which has slack in
    # this store/DMA-bound kernel); the minor-dim merge is the relayout that
    # buys unmasked 128-lane stores and a contiguous writeback DMA.
    blk = jnp.swapaxes(x_ref[...], 1, 2)  # (NB, T, C)
    o_ref[...] = blk.reshape(blk.shape[0], blk.shape[1] * blk.shape[2])


def _make_flatten_3d_kernel(nb):
    def kernel(x_ref, o_ref):
        # x_ref: (NB, C, T) -> o_ref: (NB, T, C).  Statically unrolled
        # per-sample 2-D transposes (pure XLU work; stores are masked when
        # C < 128, which is why the lane-dense path is preferred).
        for i in range(nb):
            o_ref[i, :, :] = x_ref[i, :, :].T
    return kernel


def flatten_pallas(x):
    """Pallas equivalent of Flatten.forward: (N, C, H, W) -> (N, H*W, C)."""
    assert x.ndim == 4
    n, c, h, w = x.shape
    hw = h * w
    itemsize = jnp.dtype(x.dtype).itemsize

    # Free metadata view: merge the spatial dims outside the kernel so the big
    # HW axis sits on the 128-lane axis of every input tile (contiguous DMA,
    # full-width vld).
    x3 = x.reshape(n, c, hw)

    params = pltpu.CompilerParams(
        dimension_semantics=("parallel", "parallel"))

    nb, hw_tile, lane_dense = _choose_tiling(n, c, hw, itemsize)
    cfg = (n, c, hw, str(jnp.dtype(x.dtype)), nb, hw_tile)

    if lane_dense and cfg not in _LANE_DENSE_UNSUPPORTED:
        try:
            out2d = pl.pallas_call(
                _flatten_lane_dense_kernel,
                out_shape=jax.ShapeDtypeStruct((n, hw * c), x.dtype),
                grid=(n // nb, hw // hw_tile),
                in_specs=[
                    pl.BlockSpec((nb, c, hw_tile), lambda i, t: (i, 0, t)),
                ],
                out_specs=pl.BlockSpec((nb, hw_tile * c), lambda i, t: (i, t)),
                compiler_params=params,
            )(x3)
            # Contiguous (N, HW*C) -> (N, HW, C): free metadata view.
            return out2d.reshape(n, hw, c)
        except Exception:
            # Interleaving relayout not supported by this Mosaic build: fall
            # back to the (NB, hw_tile, C) layout (still batch-blocked).
            _LANE_DENSE_UNSUPPORTED.add(cfg)

    if lane_dense:
        # Re-tile for the lane-padded 3-D output footprint.
        nb, hw_tile, _ = _choose_tiling(n, c, hw, itemsize,
                                        allow_lane_dense=False)

    return pl.pallas_call(
        _make_flatten_3d_kernel(nb),
        out_shape=jax.ShapeDtypeStruct((n, hw, c), x.dtype),
        grid=(n // nb, hw // hw_tile),
        in_specs=[
            pl.BlockSpec((nb, c, hw_tile), lambda i, t: (i, 0, t)),
        ],
        out_specs=pl.BlockSpec((nb, hw_tile, c), lambda i, t: (i, t, 0)),
        compiler_params=params,
    )(x3)


if __name__ == "__main__":
    key = jax.random.PRNGKey(0)
    N, C, H, W = 2, 4, 16, 16
    x = jax.random.normal(key, (N, C, H, W), dtype=jnp.float32)

    out = jax.block_until_ready(flatten_pallas(x))

    # Pure-JAX reference matching the PyTorch forward.
    ref = jnp.transpose(x.reshape(N, C, H * W), (0, 2, 1))

    assert out.shape == (N, H * W, C), out.shape
    assert out.dtype == x.dtype
    assert jnp.array_equal(out, ref), "mismatch vs reference"

    print("KERNEL_OK")
</pallas_src>

<mosaic_0001>
module attributes {stable_mosaic.version = 11 : i64} {
  func.func @_flatten_lane_dense_kernel(%arg0: i32, %arg1: i32, %arg2: memref<2x4x128xf32, #tpu.memory_space<vmem>>, %arg3: memref<2x512xf32, #tpu.memory_space<vmem>>) attributes {dimension_semantics = [#tpu.dimension_semantics<parallel>, #tpu.dimension_semantics<parallel>], iteration_bounds = array<i64: 1, 2>, scalar_prefetch = 0 : i64, scratch_operands = 0 : i64, tpu.core_type = #tpu.core_type<tc>, window_params = [{transform_indices = @transform_0, window_bounds = array<i64: 2, 4, 128>}, {transform_indices = @transform_1, window_bounds = array<i64: 2, 512>}]} {
    %c0 = arith.constant 0 : index
    %c0_0 = arith.constant 0 : index
    %c0_1 = arith.constant 0 : index
    %0 = vector.load %arg2[%c0, %c0_0, %c0_1] : memref<2x4x128xf32, #tpu.memory_space<vmem>>, vector<2x4x128xf32>
    %1 = tpu.transpose %0, [0, 2, 1] : vector<2x4x128xf32> -> vector<2x128x4xf32>
    %2 = vector.shape_cast %1 : vector<2x128x4xf32> to vector<2x512xf32>
    %c0_2 = arith.constant 0 : index
    %c0_3 = arith.constant 0 : index
    %3 = vector.load %arg3[%c0_2, %c0_3] : memref<2x512xf32, #tpu.memory_space<vmem>>, vector<2x512xf32>
    tpu.vector_store %arg3[%c0_2, %c0_3], %2 {strides = array<i32>} : memref<2x512xf32, #tpu.memory_space<vmem>>, vector<2x512xf32>,
    return
  }
  func.func @transform_0(%arg0: i32, %arg1: i32) -> (i32, i32, i32) {
    %c0_i32 = arith.constant 0 : i32
    %c0_i32_0 = arith.constant 0 : i32
    return %arg0, %c0_i32, %arg1 : i32, i32, i32
  }
  func.func @transform_1(%arg0: i32, %arg1: i32) -> (i32, i32) {
    %c0_i32 = arith.constant 0 : i32
    return %arg0, %arg1 : i32, i32
  }
}

module attributes {stable_mosaic.version = 11 : i64} {
  func.func @kernel(%arg0: i32, %arg1: i32, %arg2: memref<1x4x256xf32, #tpu.memory_space<vmem>>, %arg3: memref<1x256x4xf32, #tpu.memory_space<vmem>>) attributes {dimension_semantics = [#tpu.dimension_semantics<parallel>, #tpu.dimension_semantics<parallel>], iteration_bounds = array<i64: 2, 1>, scalar_prefetch = 0 : i64, scratch_operands = 0 : i64, tpu.core_type = #tpu.core_type<tc>, window_params = [{transform_indices = @transform_0, window_bounds = array<i64: 1, 4, 256>}, {transform_indices = @transform_1, window_bounds = array<i64: 1, 256, 4>}]} {
    %c0 = arith.constant 0 : index
    %c0_0 = arith.constant 0 : index
    %c0_1 = arith.constant 0 : index
    %0 = vector.load %arg2[%c0, %c0_0, %c0_1] : memref<1x4x256xf32, #tpu.memory_space<vmem>>, vector<1x4x256xf32>
    %1 = vector.shape_cast %0 : vector<1x4x256xf32> to vector<4x256xf32>
    %2 = tpu.transpose %1, [1, 0] : vector<4x256xf32> -> vector<256x4xf32>
    %c0_2 = arith.constant 0 : index
    %c0_3 = arith.constant 0 : index
    %c0_4 = arith.constant 0 : index
    %3 = vector.load %arg3[%c0_2, %c0_3, %c0_4] : memref<1x256x4xf32, #tpu.memory_space<vmem>>, vector<1x256x4xf32>
    %4 = vector.shape_cast %3 : vector<1x256x4xf32> to vector<256x4xf32>
    %5 = vector.shape_cast %2 : vector<256x4xf32> to vector<1x256x4xf32>
    tpu.vector_store %arg3[%c0_2, %c0_3, %c0_4], %5 {strides = array<i32>} : memref<1x256x4xf32, #tpu.memory_space<vmem>>, vector<1x256x4xf32>,
    return
  }
  func.func @transform_0(%arg0: i32, %arg1: i32) -> (i32, i32, i32) {
    %c0_i32 = arith.constant 0 : i32
    %c0_i32_0 = arith.constant 0 : i32
    return %arg0, %c0_i32, %arg1 : i32, i32, i32
  }
  func.func @transform_1(%arg0: i32, %arg1: i32) -> (i32, i32, i32) {
    %c0_i32 = arith.constant 0 : i32
    %c0_i32_0 = arith.constant 0 : i32
    return %arg0, %arg1, %c0_i32 : i32, i32, i32
  }
}

</mosaic_0001>

<llo_original>
// kernel: tpu_custom_call.1
$region0: #{tpu_custom_call.1}
  #allocation0 [shape = 'u32[]', space=smem, size = 0x4, offset = 0x4, fixed_abs, tag = 'smem constant byte address 0x4 - core index']
  #allocation1 [shape = 'u32[72,128]{1,0:T(1,128)}', space=vmem, size = 0x9000, scoped, tag = 'internal scratch']
  %s0 = inlined_call_operand.hbm [shape: f32[2,4,256], index: 0, kind: input, shape index: {}]
  %s1 = inlined_call_operand.hbm [shape: f32[2,1024], index: 1, kind: output, shape index: {}]
  %s2 = sld [smem:[#allocation0]]
  $region41: #{tpu_custom_call.1} parent=0
    _
  %s4 = ssub.s32 1, %s2
  %s5 = scalar_select 0, %s4, %s2
  $region1: #{tpu_custom_call.1} parent=0
    #allocation2 [shape = 'u8[8192]{0}', space=vmem, size = 0x2000, scoped, tag = 'input window, operand 0']
    #allocation3 [shape = 's32[2]{0}', space=sflag, size = 0x8, scoped, tag = 'scoped memory for tpu_custom_call.1']
    #allocation4 [shape = 's32[2]{0}', space=sflag, size = 0x8, scoped, tag = 'scoped memory for tpu_custom_call.1']
    #allocation5 [shape = 'u8[8192]{0}', space=vmem, size = 0x2000, scoped, tag = 'output window, operand 0']
    %6 = vsyncpa [#allocation3], 0
    %s7 = scalar_lea.sflag [#allocation3], 1
    %8 = vsyncpa %s7, 0
    %9 = vsyncpa [#allocation4], 0
    %s10 = scalar_lea.sflag [#allocation4], 1
    %11 = vsyncpa %s10, 0
    loop: start=0, step=1, limit=4
    $region2: #{tpu_custom_call.1} parent=1 // loop_pre_header
      _
    $region3: #{tpu_custom_call.1} parent=1 // loop_header
      %s13 = sphi 0, %s17
      %p14 = scmp.ge.s32.totalorder %s13, 4
      %s20 = sphi 0, %s32
      %s21 = sphi 0, %s28
      %s22 = sphi 0, %s20
      %s23 = sphi 0, %s21
      %s24 = sphi 0, %s22
      %s25 = sphi 0, %s23
      %s37 = sphi 0, %s39
      %s40 = sphi 0, %s37
      %s41 = sphi 0, %s40
      %s57 = sphi 0, %s41
      %s65 = sphi 0, %s67
      %s68 = sphi 0, %s65
      %s69 = sphi 0, %s68
      %s85 = sphi 0, %s69
    $region4: #{tpu_custom_call.1} parent=1 // loop_header_branch
      %16 = sbr.rel (%p14) target = $region8
    $region5: #{tpu_custom_call.1} parent=1 // loop_body
      %s18 = ssub.s32 %s13, 1
      %s19 = ssub.s32 %s13, 2
      %s26 = sadd.s32 1, %s21
      %p27 = scmp.ge.s32.totalorder %s26, 2
      %s28 = scalar_select %p27, 0, %s26
      %s29 = sadd.s32 1, %s20
      %s30 = scalar_select %p27, %s29, %s20
      %p31 = scmp.ge.s32.totalorder %s30, 1
      %s32 = scalar_select %p31, 0, %s30
      %s33 = ssub.s32 %s20, %s32
      %s34 = ssub.s32 %s21, %s28
      %s35 = sor.u32 %s33, %s34
      %p36 = scmp.eq.s32.totalorder %s35, 0
      %s38 = sadd.s32 %s37, 1
      %s39 = scalar_select %p36, %s37, %s38
      %p42 = pneg %p36
      %p43 = scmp.eq.s32.totalorder %s13, 1
      %p44 = por %p42, %p43
      %p45 = scmp.ne.s32.totalorder %s37, %s40
      %p46 = scmp.eq.s32.totalorder %s13, 0
      %p47 = por %p45, %p46
      %p48 = scmp.ne.s32.totalorder %s37, %s40
      %p49 = scmp.eq.s32.totalorder %s18, 1
      %p50 = por %p48, %p49
      %p51 = scmp.ne.s32.totalorder %s40, %s41
      %p52 = scmp.eq.s32.totalorder %s18, 0
      %p53 = por %p51, %p52
      %p54 = scmp.ne.s32.totalorder %s40, %s41
      %p55 = scmp.eq.s32.totalorder %s19, 1
      %p56 = por %p54, %p55
      %p58 = scmp.ne.s32.totalorder %s41, %s57
      %p59 = scmp.eq.s32.totalorder %s19, 0
      %p60 = por %p58, %p59
      %s61 = ssub.s32 %s20, %s32
      %s62 = ssub.s32 %s21, %s28
      %s63 = sor.u32 %s61, %s62
      %p64 = scmp.eq.s32.totalorder %s63, 0
      %s66 = sadd.s32 %s65, 1
      %s67 = scalar_select %p64, %s65, %s66
      %p70 = pneg %p64
      %p71 = scmp.eq.s32.totalorder %s13, 1
      %p72 = por %p70, %p71
      %p73 = scmp.ne.s32.totalorder %s65, %s68
      %p74 = scmp.eq.s32.totalorder %s13, 0
      %p75 = por %p73, %p74
      %p76 = scmp.ne.s32.totalorder %s65, %s68
      %p77 = scmp.eq.s32.totalorder %s18, 1
      %p78 = por %p76, %p77
      %p79 = scmp.ne.s32.totalorder %s68, %s69
      %p80 = scmp.eq.s32.totalorder %s18, 0
      %p81 = por %p79, %p80
      %p82 = scmp.ne.s32.totalorder %s68, %s69
      %p83 = scmp.eq.s32.totalorder %s19, 1
      %p84 = por %p82, %p83
      %p86 = scmp.ne.s32.totalorder %s69, %s85
      %p87 = scmp.eq.s32.totalorder %s19, 0
      %p88 = por %p86, %p87
      %p89 = scmp.le.s32.totalorder 1, %s13
      %p90 = scmp.lt.s32.totalorder %s13, 3
      %p91 = pnand %p89, %p90
      %p92 = pneg %p91
      // Predicated region
      $region9: #{tpu_custom_call.1} parent=5 // pred_check
        _
      $region10: #{tpu_custom_call.1} parent=5 // pred_check_branch
        %94 = sbr.rel (%p91) target = $region12
      $region11: #{tpu_custom_call.1} parent=5 // pred_region
        %s95 = ssub.s32 %s13, 1
      $region12: #{tpu_custom_call.1} parent=5 // pred_fallthru
        _
      %p96 = scmp.lt.s32.totalorder %s13, 2
      // Predicated region
      $region13: #{tpu_custom_call.1} parent=5 // pred_check
        %p97 = pneg %p96
      $region14: #{tpu_custom_call.1} parent=5 // pred_check_branch
        %99 = sbr.rel (%p97) target = $region16
      $region15: #{tpu_custom_call.1} parent=5 // pred_region
        // Predicated region
        $region17: #{tpu_custom_call.1} parent=15 // pred_check
          %p100 = pneg %p47
        $region18: #{tpu_custom_call.1} parent=15 // pred_check_branch
          %102 = sbr.rel (%p100) target = $region20
        $region19: #{tpu_custom_call.1} parent=15 // pred_region
          %s103 = sand.u32 %s37, 1
          %s104 = scalar_lea.sflag [#allocation3], %s103
          %s105 = sand.u32 %s37, 1
          %s106 = smul.addr %s105, 8
          %s107 = scalar_lea.vmem [#allocation2], %s106
          %s108 = smul.u32 2, %s20
          %110 = vsyncadd %s104, 0
          %s111 = smul.addr %s108, 2
          %s112 = sadd.s32 %s21, %s111
          %s113 = smul.addr %s112, 4
          %s114 = scalar_lea.hbm %s0, %s113
          %s115 = sshll.u32 %s114, 4
          %s116 = int_to_ptr.hbm [resolvable:$true] %s115
          %s117 = sshll.u32 %s107, 4
          %s118 = int_to_ptr.vmem [resolvable:$true] %s117
          %123 = dma.hbm_to_vmem [thread:$0]  %s116, 128, %s118, %s104, 128, 64, 4
        $region20: #{tpu_custom_call.1} parent=15 // pred_fallthru
          _
      $region16: #{tpu_custom_call.1} parent=5 // pred_fallthru
        _
      %p124 = scmp.le.s32.totalorder 1, %s13
      %p125 = scmp.lt.s32.totalorder %s13, 3
      %p126 = pnand %p124, %p125
      %p127 = pneg %p126
      // Predicated region
      $region21: #{tpu_custom_call.1} parent=5 // pred_check
        _
      $region22: #{tpu_custom_call.1} parent=5 // pred_check_branch
        %129 = sbr.rel (%p126) target = $region24
      $region23: #{tpu_custom_call.1} parent=5 // pred_region
        %s130 = ssub.s32 %s13, 1
        %s131 = sand.u32 %s40, 1
        %s132 = scalar_lea.sflag [#allocation3], %s131
        %s133 = sand.u32 %s40, 1
        %s134 = smul.addr %s133, 8
        %s135 = scalar_lea.vmem [#allocation2], %s134
        // Predicated region
        $region25: #{tpu_custom_call.1} parent=23 // pred_check
          %p136 = pneg %p53
        $region26: #{tpu_custom_call.1} parent=23 // pred_check_branch
          %138 = sbr.rel (%p136) target = $region28
        $region27: #{tpu_custom_call.1} parent=23 // pred_region
          %140 = dma.done %s132, 128
        $region28: #{tpu_custom_call.1} parent=23 // pred_fallthru
          _
        %s141 = sand.u32 %s40, 1
        %s142 = scalar_lea.sflag [#allocation3], %s141
        %s143 = sand.u32 %s40, 1
        %s144 = smul.addr %s143, 8
        %s145 = scalar_lea.vmem [#allocation2], %s144
        %p146 = pneg %p53
        %p147 = pneg %p50
        %p148 = pneg %p81
        %p149 = pneg %p78
        %s150 = sand.u32 %s68, 1
        %s151 = scalar_lea.sflag [#allocation4], %s150
        %s152 = sand.u32 %s68, 1
        %s153 = smul.addr %s152, 8
        %s154 = scalar_lea.vmem [#allocation5], %s153
        %s155 = smul.u32 2, %s22
        %s156 = smul.u32 4, %s23
        %v157 = vld [vmem:[%s135] sm:$0xf]
        %v158 = vld [vmem:[%s135 + $0x4] sm:$0xf]
        %159 = vxpose.xlu0.b32.start [1/16] %v157, 128
        %160 = vxpose.xlu0.b32.cont [2/16] 0.0, 128
        %161 = vxpose.xlu0.b32.cont [3/16] 0.0, 128
        %162 = vxpose.xlu0.b32.cont [4/16] 0.0, 128
        %163 = vxpose.xlu0.b32.cont [5/16] 0.0, 128
        %164 = vxpose.xlu0.b32.cont [6/16] 0.0, 128
        %165 = vxpose.xlu0.b32.cont [7/16] 0.0, 128
        %166 = vxpose.xlu0.b32.cont [8/16] 0.0, 128
        %167 = vxpose.xlu0.b32.cont [9/16] 0.0, 128
        %168 = vxpose.xlu0.b32.cont [10/16] 0.0, 128
        %169 = vxpose.xlu0.b32.cont [11/16] 0.0, 128
        %170 = vxpose.xlu0.b32.cont [12/16] 0.0, 128
        %171 = vxpose.xlu0.b32.cont [13/16] 0.0, 128
        %172 = vxpose.xlu0.b32.cont [14/16] 0.0, 128
        %173 = vxpose.xlu0.b32.cont [15/16] 0.0, 128
        %174 = vxpose.xlu0.b32.end [16/16] 0.0, 128
        %v175 = vpop.trf.xlu0
        %v176 = vpop.trf.xlu0
        %v177 = vpop.trf.xlu0
        %v178 = vpop.trf.xlu0
        %v179 = vpop.trf.xlu0
        %v180 = vpop.trf.xlu0
        %v181 = vpop.trf.xlu0
        %v182 = vpop.trf.xlu0
        %v183 = vpop.trf.xlu0
        %v184 = vpop.trf.xlu0
        %v185 = vpop.trf.xlu0
        %v186 = vpop.trf.xlu0
        %v187 = vpop.trf.xlu0
        %v188 = vpop.trf.xlu0
        %v189 = vpop.trf.xlu0
        %v190 = vpop.trf.xlu0
        %191 = vxpose.xlu0.b32.start [1/16] %v158, 128
        %192 = vxpose.xlu0.b32.cont [2/16] 0.0, 128
        %193 = vxpose.xlu0.b32.cont [3/16] 0.0, 128
        %194 = vxpose.xlu0.b32.cont [4/16] 0.0, 128
        %195 = vxpose.xlu0.b32.cont [5/16] 0.0, 128
        %196 = vxpose.xlu0.b32.cont [6/16] 0.0, 128
        %197 = vxpose.xlu0.b32.cont [7/16] 0.0, 128
        %198 = vxpose.xlu0.b32.cont [8/16] 0.0, 128
        %199 = vxpose.xlu0.b32.cont [9/16] 0.0, 128
        %200 = vxpose.xlu0.b32.cont [10/16] 0.0, 128
        %201 = vxpose.xlu0.b32.cont [11/16] 0.0, 128
        %202 = vxpose.xlu0.b32.cont [12/16] 0.0, 128
        %203 = vxpose.xlu0.b32.cont [13/16] 0.0, 128
        %204 = vxpose.xlu0.b32.cont [14/16] 0.0, 128
        %205 = vxpose.xlu0.b32.cont [15/16] 0.0, 128
        %206 = vxpose.xlu0.b32.end [16/16] 0.0, 128
        %v207 = vpop.trf.xlu0
        %v208 = vpop.trf.xlu0
        %v209 = vpop.trf.xlu0
        %v210 = vpop.trf.xlu0
        %v211 = vpop.trf.xlu0
        %v212 = vpop.trf.xlu0
        %v213 = vpop.trf.xlu0
        %v214 = vpop.trf.xlu0
        %v215 = vpop.trf.xlu0
        %v216 = vpop.trf.xlu0
        %v217 = vpop.trf.xlu0
        %v218 = vpop.trf.xlu0
        %v219 = vpop.trf.xlu0
        %v220 = vpop.trf.xlu0
        %v221 = vpop.trf.xlu0
        %v222 = vpop.trf.xlu0
        %v223 = vrot.slane %v175, 4
        %vm224 = vcmask 1047556
        %v225 = vsel %vm224, 0.0, %v223
        %v227 = vunpack.c.l.s4 1983009808
        %v228 = vunpack.c.0.s8 %v227
        %v229 = vperm.slane %v175, %v228
        %v231 = vunpack.c.l.s4 1983009808
        %v232 = vunpack.c.0.s8 %v231
        %v233 = vperm.slane %v225, %v232
        %v234 = vrot.slane %v207, 4
        %v235 = vsel %vm224, 0.0, %v234
        %v237 = vunpack.c.l.s4 1983009808
        %v238 = vunpack.c.0.s8 %v237
        %v239 = vperm.slane %v207, %v238
        %v241 = vunpack.c.l.s4 1983009808
        %v242 = vunpack.c.0.s8 %v241
        %v243 = vperm.slane %v235, %v242
        %v244 = vrot.slane %v239, 4
        %v245 = vsel %vm224, %v244, %v229
        %v246 = vrot.slane %v229, 4
        %v247 = vsel %vm224, %v239, %v246
        %v249 = vunpack.c.l.s4 1934713408
        %v250 = vunpack.c.0.s8 %v249
        %v251 = vperm.slane %v245, %v250
        %v253 = vunpack.c.l.s4 1934713408
        %v254 = vunpack.c.0.s8 %v253
        %v255 = vperm.slane %v247, %v254
        %v256 = vrot.slane %v243, 4
        %v257 = vsel %vm224, %v256, %v233
        %v258 = vrot.slane %v233, 4
        %v259 = vsel %vm224, %v243, %v258
        %v261 = vunpack.c.l.s4 1934713408
        %v262 = vunpack.c.0.s8 %v261
        %v263 = vperm.slane %v257, %v262
        %v265 = vunpack.c.l.s4 1934713408
        %v266 = vunpack.c.0.s8 %v265
        %v267 = vperm.slane %v259, %v266
        %v268 = vrot.slane %v251, 4
        %v269 = vsel %vm224, 0.0, %v268
        %v270 = vrot.slane %v255, 4
        %v271 = vsel %vm224, 0.0, %v270
        %v272 = vrot.slane %v263, 4
        %v273 = vsel %vm224, 0.0, %v272
        %v274 = vrot.slane %v267, 4
        %v275 = vsel %vm224, 0.0, %v274
        %v276 = vrot.slane %v176, 4
        %v277 = vsel %vm224, 0.0, %v276
        %v279 = vunpack.c.l.s4 1983009808
        %v280 = vunpack.c.0.s8 %v279
        %v281 = vperm.slane %v176, %v280
        %v283 = vunpack.c.l.s4 1983009808
        %v284 = vunpack.c.0.s8 %v283
        %v285 = vperm.slane %v277, %v284
        %v286 = vrot.slane %v208, 4
        %v287 = vsel %vm224, 0.0, %v286
        %v289 = vunpack.c.l.s4 1983009808
        %v290 = vunpack.c.0.s8 %v289
        %v291 = vperm.slane %v208, %v290
        %v293 = vunpack.c.l.s4 1983009808
        %v294 = vunpack.c.0.s8 %v293
        %v295 = vperm.slane %v287, %v294
        %v296 = vrot.slane %v291, 4
        %v297 = vsel %vm224, %v296, %v281
        %v298 = vrot.slane %v281, 4
        %v299 = vsel %vm224, %v291, %v298
        %v301 = vunpack.c.l.s4 1934713408
        %v302 = vunpack.c.0.s8 %v301
        %v303 = vperm.slane %v297, %v302
        %v305 = vunpack.c.l.s4 1934713408
        %v306 = vunpack.c.0.s8 %v305
        %v307 = vperm.slane %v299, %v306
        %v308 = vrot.slane %v295, 4
        %v309 = vsel %vm224, %v308, %v285
        %v310 = vrot.slane %v285, 4
        %v311 = vsel %vm224, %v295, %v310
        %v313 = vunpack.c.l.s4 1934713408
        %v314 = vunpack.c.0.s8 %v313
        %v315 = vperm.slane %v309, %v314
        %v317 = vunpack.c.l.s4 1934713408
        %v318 = vunpack.c.0.s8 %v317
        %v319 = vperm.slane %v311, %v318
        %v320 = vrot.slane %v303, 4
        %v321 = vsel %vm224, 0.0, %v320
        %v322 = vrot.slane %v307, 4
        %v323 = vsel %vm224, 0.0, %v322
        %v324 = vrot.slane %v315, 4
        %v325 = vsel %vm224, 0.0, %v324
        %v326 = vrot.slane %v319, 4
        %v327 = vsel %vm224, 0.0, %v326
        %v328 = vrot.slane %v177, 4
        %v329 = vsel %vm224, 0.0, %v328
        %v331 = vunpack.c.l.s4 1983009808
        %v332 = vunpack.c.0.s8 %v331
        %v333 = vperm.slane %v177, %v332
        %v335 = vunpack.c.l.s4 1983009808
        %v336 = vunpack.c.0.s8 %v335
        %v337 = vperm.slane %v329, %v336
        %v338 = vrot.slane %v209, 4
        %v339 = vsel %vm224, 0.0, %v338
        %v341 = vunpack.c.l.s4 1983009808
        %v342 = vunpack.c.0.s8 %v341
        %v343 = vperm.slane %v209, %v342
        %v345 = vunpack.c.l.s4 1983009808
        %v346 = vunpack.c.0.s8 %v345
        %v347 = vperm.slane %v339, %v346
        %v348 = vrot.slane %v343, 4
        %v349 = vsel %vm224, %v348, %v333
        %v350 = vrot.slane %v333, 4
        %v351 = vsel %vm224, %v343, %v350
        %v353 = vunpack.c.l.s4 1934713408
        %v354 = vunpack.c.0.s8 %v353
        %v355 = vperm.slane %v349, %v354
        %v357 = vunpack.c.l.s4 1934713408
        %v358 = vunpack.c.0.s8 %v357
        %v359 = vperm.slane %v351, %v358
        %v360 = vrot.slane %v347, 4
        %v361 = vsel %vm224, %v360, %v337
        %v362 = vrot.slane %v337, 4
        %v363 = vsel %vm224, %v347, %v362
        %v365 = vunpack.c.l.s4 1934713408
        %v366 = vunpack.c.0.s8 %v365
        %v367 = vperm.slane %v361, %v366
        %v369 = vunpack.c.l.s4 1934713408
        %v370 = vunpack.c.0.s8 %v369
        %v371 = vperm.slane %v363, %v370
        %v372 = vrot.slane %v355, 4
        %v373 = vsel %vm224, 0.0, %v372
        %v374 = vrot.slane %v359, 4
        %v375 = vsel %vm224, 0.0, %v374
        %v376 = vrot.slane %v367, 4
        %v377 = vsel %vm224, 0.0, %v376
        %v378 = vrot.slane %v371, 4
        %v379 = vsel %vm224, 0.0, %v378
        %v380 = vrot.slane %v178, 4
        %v381 = vsel %vm224, 0.0, %v380
        %v383 = vunpack.c.l.s4 1983009808
        %v384 = vunpack.c.0.s8 %v383
        %v385 = vperm.slane %v178, %v384
        %v387 = vunpack.c.l.s4 1983009808
        %v388 = vunpack.c.0.s8 %v387
        %v389 = vperm.slane %v381, %v388
        %v390 = vrot.slane %v210, 4
        %v391 = vsel %vm224, 0.0, %v390
        %v393 = vunpack.c.l.s4 1983009808
        %v394 = vunpack.c.0.s8 %v393
        %v395 = vperm.slane %v210, %v394
        %v397 = vunpack.c.l.s4 1983009808
        %v398 = vunpack.c.0.s8 %v397
        %v399 = vperm.slane %v391, %v398
        %v400 = vrot.slane %v395, 4
        %v401 = vsel %vm224, %v400, %v385
        %v402 = vrot.slane %v385, 4
        %v403 = vsel %vm224, %v395, %v402
        %v405 = vunpack.c.l.s4 1934713408
        %v406 = vunpack.c.0.s8 %v405
        %v407 = vperm.slane %v401, %v406
        %v409 = vunpack.c.l.s4 1934713408
        %v410 = vunpack.c.0.s8 %v409
        %v411 = vperm.slane %v403, %v410
        %v412 = vrot.slane %v399, 4
        %v413 = vsel %vm224, %v412, %v389
        %v414 = vrot.slane %v389, 4
        %v415 = vsel %vm224, %v399, %v414
        %v417 = vunpack.c.l.s4 1934713408
        %v418 = vunpack.c.0.s8 %v417
        %v419 = vperm.slane %v413, %v418
        %v421 = vunpack.c.l.s4 1934713408
        %v422 = vunpack.c.0.s8 %v421
        %v423 = vperm.slane %v415, %v422
        %v424 = vrot.slane %v407, 4
        %v425 = vsel %vm224, 0.0, %v424
        %v426 = vrot.slane %v411, 4
        %v427 = vsel %vm224, 0.0, %v426
        %v428 = vrot.slane %v419, 4
        %v429 = vsel %vm224, 0.0, %v428
        %v430 = vrot.slane %v423, 4
        %v431 = vsel %vm224, 0.0, %v430
        %v432 = vrot.slane %v179, 4
        %v433 = vsel %vm224, 0.0, %v432
        %v435 = vunpack.c.l.s4 1983009808
        %v436 = vunpack.c.0.s8 %v435
        %v437 = vperm.slane %v179, %v436
        %v439 = vunpack.c.l.s4 1983009808
        %v440 = vunpack.c.0.s8 %v439
        %v441 = vperm.slane %v433, %v440
        %v442 = vrot.slane %v211, 4
        %v443 = vsel %vm224, 0.0, %v442
        %v445 = vunpack.c.l.s4 1983009808
        %v446 = vunpack.c.0.s8 %v445
        %v447 = vperm.slane %v211, %v446
        %v449 = vunpack.c.l.s4 1983009808
        %v450 = vunpack.c.0.s8 %v449
        %v451 = vperm.slane %v443, %v450
        %v452 = vrot.slane %v447, 4
        %v453 = vsel %vm224, %v452, %v437
        %v454 = vrot.slane %v437, 4
        %v455 = vsel %vm224, %v447, %v454
        %v457 = vunpack.c.l.s4 1934713408
        %v458 = vunpack.c.0.s8 %v457
        %v459 = vperm.slane %v453, %v458
        %v461 = vunpack.c.l.s4 1934713408
        %v462 = vunpack.c.0.s8 %v461
        %v463 = vperm.slane %v455, %v462
        %v464 = vrot.slane %v451, 4
        %v465 = vsel %vm224, %v464, %v441
        %v466 = vrot.slane %v441, 4
        %v467 = vsel %vm224, %v451, %v466
        %v469 = vunpack.c.l.s4 1934713408
        %v470 = vunpack.c.0.s8 %v469
        %v471 = vperm.slane %v465, %v470
        %v473 = vunpack.c.l.s4 1934713408
        %v474 = vunpack.c.0.s8 %v473
        %v475 = vperm.slane %v467, %v474
        %v476 = vrot.slane %v459, 4
        %v477 = vsel %vm224, 0.0, %v476
        %v478 = vrot.slane %v463, 4
        %v479 = vsel %vm224, 0.0, %v478
        %v480 = vrot.slane %v471, 4
        %v481 = vsel %vm224, 0.0, %v480
        %v482 = vrot.slane %v475, 4
        %v483 = vsel %vm224, 0.0, %v482
        %v484 = vrot.slane %v180, 4
        %v485 = vsel %vm224, 0.0, %v484
        %v487 = vunpack.c.l.s4 1983009808
        %v488 = vunpack.c.0.s8 %v487
        %v489 = vperm.slane %v180, %v488
        %v491 = vunpack.c.l.s4 1983009808
        %v492 = vunpack.c.0.s8 %v491
        %v493 = vperm.slane %v485, %v492
        %v494 = vrot.slane %v212, 4
        %v495 = vsel %vm224, 0.0, %v494
        %v497 = vunpack.c.l.s4 1983009808
        %v498 = vunpack.c.0.s8 %v497
        %v499 = vperm.slane %v212, %v498
        %v501 = vunpack.c.l.s4 1983009808
        %v502 = vunpack.c.0.s8 %v501
        %v503 = vperm.slane %v495, %v502
        %v504 = vrot.slane %v499, 4
        %v505 = vsel %vm224, %v504, %v489
        %v506 = vrot.slane %v489, 4
        %v507 = vsel %vm224, %v499, %v506
        %v509 = vunpack.c.l.s4 1934713408
        %v510 = vunpack.c.0.s8 %v509
        %v511 = vperm.slane %v505, %v510
        %v513 = vunpack.c.l.s4 1934713408
        %v514 = vunpack.c.0.s8 %v513
        %v515 = vperm.slane %v507, %v514
        %v516 = vrot.slane %v503, 4
        %v517 = vsel %vm224, %v516, %v493
        %v518 = vrot.slane %v493, 4
        %v519 = vsel %vm224, %v503, %v518
        %v521 = vunpack.c.l.s4 1934713408
        %v522 = vunpack.c.0.s8 %v521
        %v523 = vperm.slane %v517, %v522
        %v525 = vunpack.c.l.s4 1934713408
        %v526 = vunpack.c.0.s8 %v525
        %v527 = vperm.slane %v519, %v526
        %v528 = vrot.slane %v511, 4
        %v529 = vsel %vm224, 0.0, %v528
        %v530 = vrot.slane %v515, 4
        %v531 = vsel %vm224, 0.0, %v530
        %v532 = vrot.slane %v523, 4
        %v533 = vsel %vm224, 0.0, %v532
        %v534 = vrot.slane %v527, 4
        %v535 = vsel %vm224, 0.0, %v534
        %v536 = vrot.slane %v181, 4
        %v537 = vsel %vm224, 0.0, %v536
        %v539 = vunpack.c.l.s4 1983009808
        %v540 = vunpack.c.0.s8 %v539
        %v541 = vperm.slane %v181, %v540
        %v543 = vunpack.c.l.s4 1983009808
        %v544 = vunpack.c.0.s8 %v543
        %v545 = vperm.slane %v537, %v544
        %v546 = vrot.slane %v213, 4
        %v547 = vsel %vm224, 0.0, %v546
        %v549 = vunpack.c.l.s4 1983009808
        %v550 = vunpack.c.0.s8 %v549
        %v551 = vperm.slane %v213, %v550
        %v553 = vunpack.c.l.s4 1983009808
        %v554 = vunpack.c.0.s8 %v553
        %v555 = vperm.slane %v547, %v554
        %v556 = vrot.slane %v551, 4
        %v557 = vsel %vm224, %v556, %v541
        %v558 = vrot.slane %v541, 4
        %v559 = vsel %vm224, %v551, %v558
        %v561 = vunpack.c.l.s4 1934713408
        %v562 = vunpack.c.0.s8 %v561
        %v563 = vperm.slane %v557, %v562
        %v565 = vunpack.c.l.s4 1934713408
        %v566 = vunpack.c.0.s8 %v565
        %v567 = vperm.slane %v559, %v566
        %v568 = vrot.slane %v555, 4
        %v569 = vsel %vm224, %v568, %v545
        %v570 = vrot.slane %v545, 4
        %v571 = vsel %vm224, %v555, %v570
        %v573 = vunpack.c.l.s4 1934713408
        %v574 = vunpack.c.0.s8 %v573
        %v575 = vperm.slane %v569, %v574
        %v577 = vunpack.c.l.s4 1934713408
        %v578 = vunpack.c.0.s8 %v577
        %v579 = vperm.slane %v571, %v578
        %v580 = vrot.slane %v563, 4
        %v581 = vsel %vm224, 0.0, %v580
        %v582 = vrot.slane %v567, 4
        %v583 = vsel %vm224, 0.0, %v582
        %v584 = vrot.slane %v575, 4
        %v585 = vsel %vm224, 0.0, %v584
        %v586 = vrot.slane %v579, 4
        %v587 = vsel %vm224, 0.0, %v586
        %v588 = vrot.slane %v182, 4
        %v589 = vsel %vm224, 0.0, %v588
        %v591 = vunpack.c.l.s4 1983009808
        %v592 = vunpack.c.0.s8 %v591
        %v593 = vperm.slane %v182, %v592
        %v595 = vunpack.c.l.s4 1983009808
        %v596 = vunpack.c.0.s8 %v595
        %v597 = vperm.slane %v589, %v596
        %v598 = vrot.slane %v214, 4
        %v599 = vsel %vm224, 0.0, %v598
        %v601 = vunpack.c.l.s4 1983009808
        %v602 = vunpack.c.0.s8 %v601
        %v603 = vperm.slane %v214, %v602
        %v605 = vunpack.c.l.s4 1983009808
        %v606 = vunpack.c.0.s8 %v605
        %v607 = vperm.slane %v599, %v606
        %v608 = vrot.slane %v603, 4
        %v609 = vsel %vm224, %v608, %v593
        %v610 = vrot.slane %v593, 4
        %v611 = vsel %vm224, %v603, %v610
        %v613 = vunpack.c.l.s4 1934713408
        %v614 = vunpack.c.0.s8 %v613
        %v615 = vperm.slane %v609, %v614
        %v617 = vunpack.c.l.s4 1934713408
        %v618 = vunpack.c.0.s8 %v617
        %v619 = vperm.slane %v611, %v618
        %v620 = vrot.slane %v607, 4
        %v621 = vsel %vm224, %v620, %v597
        %v622 = vrot.slane %v597, 4
        %v623 = vsel %vm224, %v607, %v622
        %v625 = vunpack.c.l.s4 1934713408
        %v626 = vunpack.c.0.s8 %v625
        %v627 = vperm.slane %v621, %v626
        %v629 = vunpack.c.l.s4 1934713408
        %v630 = vunpack.c.0.s8 %v629
        %v631 = vperm.slane %v623, %v630
        %v632 = vrot.slane %v615, 4
        %v633 = vsel %vm224, 0.0, %v632
        %v634 = vrot.slane %v619, 4
        %v635 = vsel %vm224, 0.0, %v634
        %v636 = vrot.slane %v627, 4
        %v637 = vsel %vm224, 0.0, %v636
        %v638 = vrot.slane %v631, 4
        %v639 = vsel %vm224, 0.0, %v638
        %v640 = vrot.slane %v183, 4
        %v641 = vsel %vm224, 0.0, %v640
        %v643 = vunpack.c.l.s4 1983009808
        %v644 = vunpack.c.0.s8 %v643
        %v645 = vperm.slane %v183, %v644
        %v647 = vunpack.c.l.s4 1983009808
        %v648 = vunpack.c.0.s8 %v647
        %v649 = vperm.slane %v641, %v648
        %v650 = vrot.slane %v215, 4
        %v651 = vsel %vm224, 0.0, %v650
        %v653 = vunpack.c.l.s4 1983009808
        %v654 = vunpack.c.0.s8 %v653
        %v655 = vperm.slane %v215, %v654
        %v657 = vunpack.c.l.s4 1983009808
        %v658 = vunpack.c.0.s8 %v657
        %v659 = vperm.slane %v651, %v658
        %v660 = vrot.slane %v655, 4
        %v661 = vsel %vm224, %v660, %v645
        %v662 = vrot.slane %v645, 4
        %v663 = vsel %vm224, %v655, %v662
        %v665 = vunpack.c.l.s4 1934713408
        %v666 = vunpack.c.0.s8 %v665
        %v667 = vperm.slane %v661, %v666
        %v669 = vunpack.c.l.s4 1934713408
        %v670 = vunpack.c.0.s8 %v669
        %v671 = vperm.slane %v663, %v670
        %v672 = vrot.slane %v659, 4
        %v673 = vsel %vm224, %v672, %v649
        %v674 = vrot.slane %v649, 4
        %v675 = vsel %vm224, %v659, %v674
        %v677 = vunpack.c.l.s4 1934713408
        %v678 = vunpack.c.0.s8 %v677
        %v679 = vperm.slane %v673, %v678
        %v681 = vunpack.c.l.s4 1934713408
        %v682 = vunpack.c.0.s8 %v681
        %v683 = vperm.slane %v675, %v682
        %v684 = vrot.slane %v667, 4
        %v685 = vsel %vm224, 0.0, %v684
        %v686 = vrot.slane %v671, 4
        %v687 = vsel %vm224, 0.0, %v686
        %v688 = vrot.slane %v679, 4
        %v689 = vsel %vm224, 0.0, %v688
        %v690 = vrot.slane %v683, 4
        %v691 = vsel %vm224, 0.0, %v690
        %v692 = vrot.slane %v184, 4
        %v693 = vsel %vm224, 0.0, %v692
        %v695 = vunpack.c.l.s4 1983009808
        %v696 = vunpack.c.0.s8 %v695
        %v697 = vperm.slane %v184, %v696
        %v699 = vunpack.c.l.s4 1983009808
        %v700 = vunpack.c.0.s8 %v699
        %v701 = vperm.slane %v693, %v700
        %v702 = vrot.slane %v216, 4
        %v703 = vsel %vm224, 0.0, %v702
        %v705 = vunpack.c.l.s4 1983009808
        %v706 = vunpack.c.0.s8 %v705
        %v707 = vperm.slane %v216, %v706
        %v709 = vunpack.c.l.s4 1983009808
        %v710 = vunpack.c.0.s8 %v709
        %v711 = vperm.slane %v703, %v710
        %v712 = vrot.slane %v707, 4
        %v713 = vsel %vm224, %v712, %v697
        %v714 = vrot.slane %v697, 4
        %v715 = vsel %vm224, %v707, %v714
        %v717 = vunpack.c.l.s4 1934713408
        %v718 = vunpack.c.0.s8 %v717
        %v719 = vperm.slane %v713, %v718
        %v721 = vunpack.c.l.s4 1934713408
        %v722 = vunpack.c.0.s8 %v721
        %v723 = vperm.slane %v715, %v722
        %v724 = vrot.slane %v711, 4
        %v725 = vsel %vm224, %v724, %v701
        %v726 = vrot.slane %v701, 4
        %v727 = vsel %vm224, %v711, %v726
        %v729 = vunpack.c.l.s4 1934713408
        %v730 = vunpack.c.0.s8 %v729
        %v731 = vperm.slane %v725, %v730
        %v733 = vunpack.c.l.s4 1934713408
        %v734 = vunpack.c.0.s8 %v733
        %v735 = vperm.slane %v727, %v734
        %v736 = vrot.slane %v719, 4
        %v737 = vsel %vm224, 0.0, %v736
        %v738 = vrot.slane %v723, 4
        %v739 = vsel %vm224, 0.0, %v738
        %v740 = vrot.slane %v731, 4
        %v741 = vsel %vm224, 0.0, %v740
        %v742 = vrot.slane %v735, 4
        %v743 = vsel %vm224, 0.0, %v742
        %v744 = vrot.slane %v185, 4
        %v745 = vsel %vm224, 0.0, %v744
        %v747 = vunpack.c.l.s4 1983009808
        %v748 = vunpack.c.0.s8 %v747
        %v749 = vperm.slane %v185, %v748
        %v751 = vunpack.c.l.s4 1983009808
        %v752 = vunpack.c.0.s8 %v751
        %v753 = vperm.slane %v745, %v752
        %v754 = vrot.slane %v217, 4
        %v755 = vsel %vm224, 0.0, %v754
        %v757 = vunpack.c.l.s4 1983009808
        %v758 = vunpack.c.0.s8 %v757
        %v759 = vperm.slane %v217, %v758
        %v761 = vunpack.c.l.s4 1983009808
        %v762 = vunpack.c.0.s8 %v761
        %v763 = vperm.slane %v755, %v762
        %v764 = vrot.slane %v759, 4
        %v765 = vsel %vm224, %v764, %v749
        %v766 = vrot.slane %v749, 4
        %v767 = vsel %vm224, %v759, %v766
        %v769 = vunpack.c.l.s4 1934713408
        %v770 = vunpack.c.0.s8 %v769
        %v771 = vperm.slane %v765, %v770
        %v773 = vunpack.c.l.s4 1934713408
        %v774 = vunpack.c.0.s8 %v773
        %v775 = vperm.slane %v767, %v774
        %v776 = vrot.slane %v763, 4
        %v777 = vsel %vm224, %v776, %v753
        %v778 = vrot.slane %v753, 4
        %v779 = vsel %vm224, %v763, %v778
        %v781 = vunpack.c.l.s4 1934713408
        %v782 = vunpack.c.0.s8 %v781
        %v783 = vperm.slane %v777, %v782
        %v785 = vunpack.c.l.s4 1934713408
        %v786 = vunpack.c.0.s8 %v785
        %v787 = vperm.slane %v779, %v786
        %v788 = vrot.slane %v771, 4
        %v789 = vsel %vm224, 0.0, %v788
        %v790 = vrot.slane %v775, 4
        %v791 = vsel %vm224, 0.0, %v790
        %v792 = vrot.slane %v783, 4
        %v793 = vsel %vm224, 0.0, %v792
        %v794 = vrot.slane %v787, 4
        %v795 = vsel %vm224, 0.0, %v794
        %v796 = vrot.slane %v186, 4
        %v797 = vsel %vm224, 0.0, %v796
        %v799 = vunpack.c.l.s4 1983009808
        %v800 = vunpack.c.0.s8 %v799
        %v801 = vperm.slane %v186, %v800
        %v803 = vunpack.c.l.s4 1983009808
        %v804 = vunpack.c.0.s8 %v803
        %v805 = vperm.slane %v797, %v804
        %v806 = vrot.slane %v218, 4
        %v807 = vsel %vm224, 0.0, %v806
        %v809 = vunpack.c.l.s4 1983009808
        %v810 = vunpack.c.0.s8 %v809
        %v811 = vperm.slane %v218, %v810
        %v813 = vunpack.c.l.s4 1983009808
        %v814 = vunpack.c.0.s8 %v813
        %v815 = vperm.slane %v807, %v814
        %v816 = vrot.slane %v811, 4
        %v817 = vsel %vm224, %v816, %v801
        %v818 = vrot.slane %v801, 4
        %v819 = vsel %vm224, %v811, %v818
        %v821 = vunpack.c.l.s4 1934713408
        %v822 = vunpack.c.0.s8 %v821
        %v823 = vperm.slane %v817, %v822
        %v825 = vunpack.c.l.s4 1934713408
        %v826 = vunpack.c.0.s8 %v825
        %v827 = vperm.slane %v819, %v826
        %v828 = vrot.slane %v815, 4
        %v829 = vsel %vm224, %v828, %v805
        %v830 = vrot.slane %v805, 4
        %v831 = vsel %vm224, %v815, %v830
        %v833 = vunpack.c.l.s4 1934713408
        %v834 = vunpack.c.0.s8 %v833
        %v835 = vperm.slane %v829, %v834
        %v837 = vunpack.c.l.s4 1934713408
        %v838 = vunpack.c.0.s8 %v837
        %v839 = vperm.slane %v831, %v838
        %v840 = vrot.slane %v823, 4
        %v841 = vsel %vm224, 0.0, %v840
        %v842 = vrot.slane %v827, 4
        %v843 = vsel %vm224, 0.0, %v842
        %v844 = vrot.slane %v835, 4
        %v845 = vsel %vm224, 0.0, %v844
        %v846 = vrot.slane %v839, 4
        %v847 = vsel %vm224, 0.0, %v846
        %v848 = vrot.slane %v187, 4
        %v849 = vsel %vm224, 0.0, %v848
        %v851 = vunpack.c.l.s4 1983009808
        %v852 = vunpack.c.0.s8 %v851
        %v853 = vperm.slane %v187, %v852
        %v855 = vunpack.c.l.s4 1983009808
        %v856 = vunpack.c.0.s8 %v855
        %v857 = vperm.slane %v849, %v856
        %v858 = vrot.slane %v219, 4
        %v859 = vsel %vm224, 0.0, %v858
        %v861 = vunpack.c.l.s4 1983009808
        %v862 = vunpack.c.0.s8 %v861
        %v863 = vperm.slane %v219, %v862
        %v865 = vunpack.c.l.s4 1983009808
        %v866 = vunpack.c.0.s8 %v865
        %v867 = vperm.slane %v859, %v866
        %v868 = vrot.slane %v863, 4
        %v869 = vsel %vm224, %v868, %v853
        %v870 = vrot.slane %v853, 4
        %v871 = vsel %vm224, %v863, %v870
        %v873 = vunpack.c.l.s4 1934713408
        %v874 = vunpack.c.0.s8 %v873
        %v875 = vperm.slane %v869, %v874
        %v877 = vunpack.c.l.s4 1934713408
        %v878 = vunpack.c.0.s8 %v877
        %v879 = vperm.slane %v871, %v878
        %v880 = vrot.slane %v867, 4
        %v881 = vsel %vm224, %v880, %v857
        %v882 = vrot.slane %v857, 4
        %v883 = vsel %vm224, %v867, %v882
        %v885 = vunpack.c.l.s4 1934713408
        %v886 = vunpack.c.0.s8 %v885
        %v887 = vperm.slane %v881, %v886
        %v889 = vunpack.c.l.s4 1934713408
        %v890 = vunpack.c.0.s8 %v889
        %v891 = vperm.slane %v883, %v890
        %v892 = vrot.slane %v875, 4
        %v893 = vsel %vm224, 0.0, %v892
        %v894 = vrot.slane %v879, 4
        %v895 = vsel %vm224, 0.0, %v894
        %v896 = vrot.slane %v887, 4
        %v897 = vsel %vm224, 0.0, %v896
        %v898 = vrot.slane %v891, 4
        %v899 = vsel %vm224, 0.0, %v898
        %v900 = vrot.slane %v188, 4
        %v901 = vsel %vm224, 0.0, %v900
        %v903 = vunpack.c.l.s4 1983009808
        %v904 = vunpack.c.0.s8 %v903
        %v905 = vperm.slane %v188, %v904
        %v907 = vunpack.c.l.s4 1983009808
        %v908 = vunpack.c.0.s8 %v907
        %v909 = vperm.slane %v901, %v908
        %v910 = vrot.slane %v220, 4
        %v911 = vsel %vm224, 0.0, %v910
        %v913 = vunpack.c.l.s4 1983009808
        %v914 = vunpack.c.0.s8 %v913
        %v915 = vperm.slane %v220, %v914
        %v917 = vunpack.c.l.s4 1983009808
        %v918 = vunpack.c.0.s8 %v917
        %v919 = vperm.slane %v911, %v918
        %v920 = vrot.slane %v915, 4
        %v921 = vsel %vm224, %v920, %v905
        %v922 = vrot.slane %v905, 4
        %v923 = vsel %vm224, %v915, %v922
        %v925 = vunpack.c.l.s4 1934713408
        %v926 = vunpack.c.0.s8 %v925
        %v927 = vperm.slane %v921, %v926
        %v929 = vunpack.c.l.s4 1934713408
        %v930 = vunpack.c.0.s8 %v929
        %v931 = vperm.slane %v923, %v930
        %v932 = vrot.slane %v919, 4
        %v933 = vsel %vm224, %v932, %v909
        %v934 = vrot.slane %v909, 4
        %v935 = vsel %vm224, %v919, %v934
        %v937 = vunpack.c.l.s4 1934713408
        %v938 = vunpack.c.0.s8 %v937
        %v939 = vperm.slane %v933, %v938
        %v941 = vunpack.c.l.s4 1934713408
        %v942 = vunpack.c.0.s8 %v941
        %v943 = vperm.slane %v935, %v942
        %v944 = vrot.slane %v927, 4
        %v945 = vsel %vm224, 0.0, %v944
        %v946 = vrot.slane %v931, 4
        %v947 = vsel %vm224, 0.0, %v946
        %v948 = vrot.slane %v939, 4
        %v949 = vsel %vm224, 0.0, %v948
        %v950 = vrot.slane %v943, 4
        %v951 = vsel %vm224, 0.0, %v950
        %v952 = vrot.slane %v189, 4
        %v953 = vsel %vm224, 0.0, %v952
        %v955 = vunpack.c.l.s4 1983009808
        %v956 = vunpack.c.0.s8 %v955
        %v957 = vperm.slane %v189, %v956
        %v959 = vunpack.c.l.s4 1983009808
        %v960 = vunpack.c.0.s8 %v959
        %v961 = vperm.slane %v953, %v960
        %v962 = vrot.slane %v221, 4
        %v963 = vsel %vm224, 0.0, %v962
        %v965 = vunpack.c.l.s4 1983009808
        %v966 = vunpack.c.0.s8 %v965
        %v967 = vperm.slane %v221, %v966
        %v969 = vunpack.c.l.s4 1983009808
        %v970 = vunpack.c.0.s8 %v969
        %v971 = vperm.slane %v963, %v970
        %v972 = vrot.slane %v967, 4
        %v973 = vsel %vm224, %v972, %v957
        %v974 = vrot.slane %v957, 4
        %v975 = vsel %vm224, %v967, %v974
        %v977 = vunpack.c.l.s4 1934713408
        %v978 = vunpack.c.0.s8 %v977
        %v979 = vperm.slane %v973, %v978
        %v981 = vunpack.c.l.s4 1934713408
        %v982 = vunpack.c.0.s8 %v981
        %v983 = vperm.slane %v975, %v982
        %v984 = vrot.slane %v971, 4
        %v985 = vsel %vm224, %v984, %v961
        %v986 = vrot.slane %v961, 4
        %v987 = vsel %vm224, %v971, %v986
        %v989 = vunpack.c.l.s4 1934713408
        %v990 = vunpack.c.0.s8 %v989
        %v991 = vperm.slane %v985, %v990
        %v993 = vunpack.c.l.s4 1934713408
        %v994 = vunpack.c.0.s8 %v993
        %v995 = vperm.slane %v987, %v994
        %v996 = vrot.slane %v979, 4
        %v997 = vsel %vm224, 0.0, %v996
        %v998 = vrot.slane %v983, 4
        %v999 = vsel %vm224, 0.0, %v998
        %v1000 = vrot.slane %v991, 4
        %v1001 = vsel %vm224, 0.0, %v1000
        %v1002 = vrot.slane %v995, 4
        %v1003 = vsel %vm224, 0.0, %v1002
        %v1004 = vrot.slane %v190, 4
        %v1005 = vsel %vm224, 0.0, %v1004
        %v1007 = vunpack.c.l.s4 1983009808
        %v1008 = vunpack.c.0.s8 %v1007
        %v1009 = vperm.slane %v190, %v1008
        %v1011 = vunpack.c.l.s4 1983009808
        %v1012 = vunpack.c.0.s8 %v1011
        %v1013 = vperm.slane %v1005, %v1012
        %v1014 = vrot.slane %v222, 4
        %v1015 = vsel %vm224, 0.0, %v1014
        %v1017 = vunpack.c.l.s4 1983009808
        %v1018 = vunpack.c.0.s8 %v1017
        %v1019 = vperm.slane %v222, %v1018
        %v1021 = vunpack.c.l.s4 1983009808
        %v1022 = vunpack.c.0.s8 %v1021
        %v1023 = vperm.slane %v1015, %v1022
        %v1024 = vrot.slane %v1019, 4
        %v1025 = vsel %vm224, %v1024, %v1009
        %v1026 = vrot.slane %v1009, 4
        %v1027 = vsel %vm224, %v1019, %v1026
        %v1029 = vunpack.c.l.s4 1934713408
        %v1030 = vunpack.c.0.s8 %v1029
        %v1031 = vperm.slane %v1025, %v1030
        %v1033 = vunpack.c.l.s4 1934713408
        %v1034 = vunpack.c.0.s8 %v1033
        %v1035 = vperm.slane %v1027, %v1034
        %v1036 = vrot.slane %v1023, 4
        %v1037 = vsel %vm224, %v1036, %v1013
        %v1038 = vrot.slane %v1013, 4
        %v1039 = vsel %vm224, %v1023, %v1038
        %v1041 = vunpack.c.l.s4 1934713408
        %v1042 = vunpack.c.0.s8 %v1041
        %v1043 = vperm.slane %v1037, %v1042
        %v1045 = vunpack.c.l.s4 1934713408
        %v1046 = vunpack.c.0.s8 %v1045
        %v1047 = vperm.slane %v1039, %v1046
        %v1048 = vrot.slane %v1031, 4
        %v1049 = vsel %vm224, 0.0, %v1048
        %v1050 = vrot.slane %v1035, 4
        %v1051 = vsel %vm224, 0.0, %v1050
        %v1052 = vrot.slane %v1043, 4
        %v1053 = vsel %vm224, 0.0, %v1052
        %v1054 = vrot.slane %v1047, 4
        %v1055 = vsel %vm224, 0.0, %v1054
        %1057 = vrot.lane.b32.xlu0 %v269, 4
        %v1058 = vpop.permute.xlu0 %1057
        %1061 = vrot.lane.b32.xlu0 %v255, 8
        %v1062 = vpop.permute.xlu0 %1061
        %1065 = vrot.lane.b32.xlu0 %v271, 12
        %v1066 = vpop.permute.xlu0 %1065
        %1069 = vrot.lane.b32.xlu0 %v263, 16
        %v1070 = vpop.permute.xlu0 %1069
        %1073 = vrot.lane.b32.xlu0 %v273, 20
        %v1074 = vpop.permute.xlu0 %1073
        %1077 = vrot.lane.b32.xlu0 %v267, 24
        %v1078 = vpop.permute.xlu0 %1077
        %1081 = vrot.lane.b32.xlu0 %v275, 28
        %v1082 = vpop.permute.xlu0 %1081
        %1085 = vrot.lane.b32.xlu0 %v303, 32
        %v1086 = vpop.permute.xlu0 %1085
        %1089 = vrot.lane.b32.xlu0 %v321, 36
        %v1090 = vpop.permute.xlu0 %1089
        %1093 = vrot.lane.b32.xlu0 %v307, 40
        %v1094 = vpop.permute.xlu0 %1093
        %1097 = vrot.lane.b32.xlu0 %v323, 44
        %v1098 = vpop.permute.xlu0 %1097
        %1101 = vrot.lane.b32.xlu0 %v315, 48
        %v1102 = vpop.permute.xlu0 %1101
        %1105 = vrot.lane.b32.xlu0 %v325, 52
        %v1106 = vpop.permute.xlu0 %1105
        %1109 = vrot.lane.b32.xlu0 %v319, 56
        %v1110 = vpop.permute.xlu0 %1109
        %1113 = vrot.lane.b32.xlu0 %v327, 60
        %v1114 = vpop.permute.xlu0 %1113
        %1117 = vrot.lane.b32.xlu0 %v355, 64
        %v1118 = vpop.permute.xlu0 %1117
        %1121 = vrot.lane.b32.xlu0 %v373, 68
        %v1122 = vpop.permute.xlu0 %1121
        %1125 = vrot.lane.b32.xlu0 %v359, 72
        %v1126 = vpop.permute.xlu0 %1125
        %1129 = vrot.lane.b32.xlu0 %v375, 76
        %v1130 = vpop.permute.xlu0 %1129
        %1133 = vrot.lane.b32.xlu0 %v367, 80
        %v1134 = vpop.permute.xlu0 %1133
        %1137 = vrot.lane.b32.xlu0 %v377, 84
        %v1138 = vpop.permute.xlu0 %1137
        %1141 = vrot.lane.b32.xlu0 %v371, 88
        %v1142 = vpop.permute.xlu0 %1141
        %1145 = vrot.lane.b32.xlu0 %v379, 92
        %v1146 = vpop.permute.xlu0 %1145
        %1149 = vrot.lane.b32.xlu0 %v407, 96
        %v1150 = vpop.permute.xlu0 %1149
        %1153 = vrot.lane.b32.xlu0 %v425, 100
        %v1154 = vpop.permute.xlu0 %1153
        %1157 = vrot.lane.b32.xlu0 %v411, 104
        %v1158 = vpop.permute.xlu0 %1157
        %1161 = vrot.lane.b32.xlu0 %v427, 108
        %v1162 = vpop.permute.xlu0 %1161
        %1165 = vrot.lane.b32.xlu0 %v419, 112
        %v1166 = vpop.permute.xlu0 %1165
        %1169 = vrot.lane.b32.xlu0 %v429, 116
        %v1170 = vpop.permute.xlu0 %1169
        %1173 = vrot.lane.b32.xlu0 %v423, 120
        %v1174 = vpop.permute.xlu0 %1173
        %1177 = vrot.lane.b32.xlu0 %v431, 124
        %v1178 = vpop.permute.xlu0 %1177
        %1181 = vrot.lane.b32.xlu0 %v477, 4
        %v1182 = vpop.permute.xlu0 %1181
        %1185 = vrot.lane.b32.xlu0 %v463, 8
        %v1186 = vpop.permute.xlu0 %1185
        %1189 = vrot.lane.b32.xlu0 %v479, 12
        %v1190 = vpop.permute.xlu0 %1189
        %1193 = vrot.lane.b32.xlu0 %v471, 16
        %v1194 = vpop.permute.xlu0 %1193
        %1197 = vrot.lane.b32.xlu0 %v481, 20
        %v1198 = vpop.permute.xlu0 %1197
        %1201 = vrot.lane.b32.xlu0 %v475, 24
        %v1202 = vpop.permute.xlu0 %1201
        %1205 = vrot.lane.b32.xlu0 %v483, 28
        %v1206 = vpop.permute.xlu0 %1205
        %1209 = vrot.lane.b32.xlu0 %v511, 32
        %v1210 = vpop.permute.xlu0 %1209
        %1213 = vrot.lane.b32.xlu0 %v529, 36
        %v1214 = vpop.permute.xlu0 %1213
        %1217 = vrot.lane.b32.xlu0 %v515, 40
        %v1218 = vpop.permute.xlu0 %1217
        %1221 = vrot.lane.b32.xlu0 %v531, 44
        %v1222 = vpop.permute.xlu0 %1221
        %1225 = vrot.lane.b32.xlu0 %v523, 48
        %v1226 = vpop.permute.xlu0 %1225
        %1229 = vrot.lane.b32.xlu0 %v533, 52
        %v1230 = vpop.permute.xlu0 %1229
        %1233 = vrot.lane.b32.xlu0 %v527, 56
        %v1234 = vpop.permute.xlu0 %1233
        %1237 = vrot.lane.b32.xlu0 %v535, 60
        %v1238 = vpop.permute.xlu0 %1237
        %1241 = vrot.lane.b32.xlu0 %v563, 64
        %v1242 = vpop.permute.xlu0 %1241
        %1245 = vrot.lane.b32.xlu0 %v581, 68
        %v1246 = vpop.permute.xlu0 %1245
        %1249 = vrot.lane.b32.xlu0 %v567, 72
        %v1250 = vpop.permute.xlu0 %1249
        %1253 = vrot.lane.b32.xlu0 %v583, 76
        %v1254 = vpop.permute.xlu0 %1253
        %1257 = vrot.lane.b32.xlu0 %v575, 80
        %v1258 = vpop.permute.xlu0 %1257
        %1261 = vrot.lane.b32.xlu0 %v585, 84
        %v1262 = vpop.permute.xlu0 %1261
        %1265 = vrot.lane.b32.xlu0 %v579, 88
        %v1266 = vpop.permute.xlu0 %1265
        %1269 = vrot.lane.b32.xlu0 %v587, 92
        %v1270 = vpop.permute.xlu0 %1269
        %1273 = vrot.lane.b32.xlu0 %v615, 96
        %v1274 = vpop.permute.xlu0 %1273
        %1277 = vrot.lane.b32.xlu0 %v633, 100
        %v1278 = vpop.permute.xlu0 %1277
        %1281 = vrot.lane.b32.xlu0 %v619, 104
        %v1282 = vpop.permute.xlu0 %1281
        %1285 = vrot.lane.b32.xlu0 %v635, 108
        %v1286 = vpop.permute.xlu0 %1285
        %1289 = vrot.lane.b32.xlu0 %v627, 112
        %v1290 = vpop.permute.xlu0 %1289
        %1293 = vrot.lane.b32.xlu0 %v637, 116
        %v1294 = vpop.permute.xlu0 %1293
        %1297 = vrot.lane.b32.xlu0 %v631, 120
        %v1298 = vpop.permute.xlu0 %1297
        %1301 = vrot.lane.b32.xlu0 %v639, 124
        %v1302 = vpop.permute.xlu0 %1301
        %1305 = vrot.lane.b32.xlu0 %v685, 4
        %v1306 = vpop.permute.xlu0 %1305
        %1309 = vrot.lane.b32.xlu0 %v671, 8
        %v1310 = vpop.permute.xlu0 %1309
        %1313 = vrot.lane.b32.xlu0 %v687, 12
        %v1314 = vpop.permute.xlu0 %1313
        %1317 = vrot.lane.b32.xlu0 %v679, 16
        %v1318 = vpop.permute.xlu0 %1317
        %1321 = vrot.lane.b32.xlu0 %v689, 20
        %v1322 = vpop.permute.xlu0 %1321
        %1325 = vrot.lane.b32.xlu0 %v683, 24
        %v1326 = vpop.permute.xlu0 %1325
        %1329 = vrot.lane.b32.xlu0 %v691, 28
        %v1330 = vpop.permute.xlu0 %1329
        %1333 = vrot.lane.b32.xlu0 %v719, 32
        %v1334 = vpop.permute.xlu0 %1333
        %1337 = vrot.lane.b32.xlu0 %v737, 36
        %v1338 = vpop.permute.xlu0 %1337
        %1341 = vrot.lane.b32.xlu0 %v723, 40
        %v1342 = vpop.permute.xlu0 %1341
        %1345 = vrot.lane.b32.xlu0 %v739, 44
        %v1346 = vpop.permute.xlu0 %1345
        %1349 = vrot.lane.b32.xlu0 %v731, 48
        %v1350 = vpop.permute.xlu0 %1349
        %1353 = vrot.lane.b32.xlu0 %v741, 52
        %v1354 = vpop.permute.xlu0 %1353
        %1357 = vrot.lane.b32.xlu0 %v735, 56
        %v1358 = vpop.permute.xlu0 %1357
        %1361 = vrot.lane.b32.xlu0 %v743, 60
        %v1362 = vpop.permute.xlu0 %1361
        %1365 = vrot.lane.b32.xlu0 %v771, 64
        %v1366 = vpop.permute.xlu0 %1365
        %1369 = vrot.lane.b32.xlu0 %v789, 68
        %v1370 = vpop.permute.xlu0 %1369
        %1373 = vrot.lane.b32.xlu0 %v775, 72
        %v1374 = vpop.permute.xlu0 %1373
        %1377 = vrot.lane.b32.xlu0 %v791, 76
        %v1378 = vpop.permute.xlu0 %1377
        %1381 = vrot.lane.b32.xlu0 %v783, 80
        %v1382 = vpop.permute.xlu0 %1381
        %1385 = vrot.lane.b32.xlu0 %v793, 84
        %v1386 = vpop.permute.xlu0 %1385
        %1389 = vrot.lane.b32.xlu0 %v787, 88
        %v1390 = vpop.permute.xlu0 %1389
        %1393 = vrot.lane.b32.xlu0 %v795, 92
        %v1394 = vpop.permute.xlu0 %1393
        %1397 = vrot.lane.b32.xlu0 %v823, 96
        %v1398 = vpop.permute.xlu0 %1397
        %1401 = vrot.lane.b32.xlu0 %v841, 100
        %v1402 = vpop.permute.xlu0 %1401
        %1405 = vrot.lane.b32.xlu0 %v827, 104
        %v1406 = vpop.permute.xlu0 %1405
        %1409 = vrot.lane.b32.xlu0 %v843, 108
        %v1410 = vpop.permute.xlu0 %1409
        %1413 = vrot.lane.b32.xlu0 %v835, 112
        %v1414 = vpop.permute.xlu0 %1413
        %1417 = vrot.lane.b32.xlu0 %v845, 116
        %v1418 = vpop.permute.xlu0 %1417
        %1421 = vrot.lane.b32.xlu0 %v839, 120
        %v1422 = vpop.permute.xlu0 %1421
        %1425 = vrot.lane.b32.xlu0 %v847, 124
        %v1426 = vpop.permute.xlu0 %1425
        %1429 = vrot.lane.b32.xlu0 %v893, 4
        %v1430 = vpop.permute.xlu0 %1429
        %1433 = vrot.lane.b32.xlu0 %v879, 8
        %v1434 = vpop.permute.xlu0 %1433
        %1437 = vrot.lane.b32.xlu0 %v895, 12
        %v1438 = vpop.permute.xlu0 %1437
        %1441 = vrot.lane.b32.xlu0 %v887, 16
        %v1442 = vpop.permute.xlu0 %1441
        %1445 = vrot.lane.b32.xlu0 %v897, 20
        %v1446 = vpop.permute.xlu0 %1445
        %1449 = vrot.lane.b32.xlu0 %v891, 24
        %v1450 = vpop.permute.xlu0 %1449
        %1453 = vrot.lane.b32.xlu0 %v899, 28
        %v1454 = vpop.permute.xlu0 %1453
        %1457 = vrot.lane.b32.xlu0 %v927, 32
        %v1458 = vpop.permute.xlu0 %1457
        %1461 = vrot.lane.b32.xlu0 %v945, 36
        %v1462 = vpop.permute.xlu0 %1461
        %1465 = vrot.lane.b32.xlu0 %v931, 40
        %v1466 = vpop.permute.xlu0 %1465
        %1469 = vrot.lane.b32.xlu0 %v947, 44
        %v1470 = vpop.permute.xlu0 %1469
        %1473 = vrot.lane.b32.xlu0 %v939, 48
        %v1474 = vpop.permute.xlu0 %1473
        %1477 = vrot.lane.b32.xlu0 %v949, 52
        %v1478 = vpop.permute.xlu0 %1477
        %1481 = vrot.lane.b32.xlu0 %v943, 56
        %v1482 = vpop.permute.xlu0 %1481
        %1485 = vrot.lane.b32.xlu0 %v951, 60
        %v1486 = vpop.permute.xlu0 %1485
        %1489 = vrot.lane.b32.xlu0 %v979, 64
        %v1490 = vpop.permute.xlu0 %1489
        %1493 = vrot.lane.b32.xlu0 %v997, 68
        %v1494 = vpop.permute.xlu0 %1493
        %1497 = vrot.lane.b32.xlu0 %v983, 72
        %v1498 = vpop.permute.xlu0 %1497
        %1501 = vrot.lane.b32.xlu0 %v999, 76
        %v1502 = vpop.permute.xlu0 %1501
        %1505 = vrot.lane.b32.xlu0 %v991, 80
        %v1506 = vpop.permute.xlu0 %1505
        %1509 = vrot.lane.b32.xlu0 %v1001, 84
        %v1510 = vpop.permute.xlu0 %1509
        %1513 = vrot.lane.b32.xlu0 %v995, 88
        %v1514 = vpop.permute.xlu0 %1513
        %1517 = vrot.lane.b32.xlu0 %v1003, 92
        %v1518 = vpop.permute.xlu0 %1517
        %1521 = vrot.lane.b32.xlu0 %v1031, 96
        %v1522 = vpop.permute.xlu0 %1521
        %1525 = vrot.lane.b32.xlu0 %v1049, 100
        %v1526 = vpop.permute.xlu0 %1525
        %1529 = vrot.lane.b32.xlu0 %v1035, 104
        %v1530 = vpop.permute.xlu0 %1529
        %1533 = vrot.lane.b32.xlu0 %v1051, 108
        %v1534 = vpop.permute.xlu0 %1533
        %1537 = vrot.lane.b32.xlu0 %v1043, 112
        %v1538 = vpop.permute.xlu0 %1537
        %1541 = vrot.lane.b32.xlu0 %v1053, 116
        %v1542 = vpop.permute.xlu0 %1541
        %1545 = vrot.lane.b32.xlu0 %v1047, 120
        %v1546 = vpop.permute.xlu0 %1545
        %1549 = vrot.lane.b32.xlu0 %v1055, 124
        %v1550 = vpop.permute.xlu0 %1549
        %vm1552 = vcmask 31744
        %v1553 = vsel %vm1552, %v251, %v1058
        %vm1554 = vcmask 64512
        %v1555 = vsel %vm1554, %v1553, %v1062
        %vm1556 = vcmask 97280
        %v1557 = vsel %vm1556, %v1555, %v1066
        %vm1558 = vcmask 130048
        %v1559 = vsel %vm1558, %v1557, %v1070
        %vm1560 = vcmask 162816
        %v1561 = vsel %vm1560, %v1559, %v1074
        %vm1562 = vcmask 195584
        %v1563 = vsel %vm1562, %v1561, %v1078
        %vm1564 = vcmask 228352
        %v1565 = vsel %vm1564, %v1563, %v1082
        %vm1566 = vcmask 261120
        %v1567 = vsel %vm1566, %v1565, %v1086
        %vm1568 = vcmask 293888
        %v1569 = vsel %vm1568, %v1567, %v1090
        %vm1570 = vcmask 326656
        %v1571 = vsel %vm1570, %v1569, %v1094
        %vm1572 = vcmask 359424
        %v1573 = vsel %vm1572, %v1571, %v1098
        %vm1574 = vcmask 392192
        %v1575 = vsel %vm1574, %v1573, %v1102
        %vm1576 = vcmask 424960
        %v1577 = vsel %vm1576, %v1575, %v1106
        %vm1578 = vcmask 457728
        %v1579 = vsel %vm1578, %v1577, %v1110
        %vm1580 = vcmask 490496
        %v1581 = vsel %vm1580, %v1579, %v1114
        %vm1582 = vcmask 523264
        %v1583 = vsel %vm1582, %v1581, %v1118
        %vm1584 = vcmask 556032
        %v1585 = vsel %vm1584, %v1583, %v1122
        %vm1586 = vcmask 588800
        %v1587 = vsel %vm1586, %v1585, %v1126
        %vm1588 = vcmask 621568
        %v1589 = vsel %vm1588, %v1587, %v1130
        %vm1590 = vcmask 654336
        %v1591 = vsel %vm1590, %v1589, %v1134
        %vm1592 = vcmask 687104
        %v1593 = vsel %vm1592, %v1591, %v1138
        %vm1594 = vcmask 719872
        %v1595 = vsel %vm1594, %v1593, %v1142
        %vm1596 = vcmask 752640
        %v1597 = vsel %vm1596, %v1595, %v1146
        %vm1598 = vcmask 785408
        %v1599 = vsel %vm1598, %v1597, %v1150
        %vm1600 = vcmask 818176
        %v1601 = vsel %vm1600, %v1599, %v1154
        %vm1602 = vcmask 850944
        %v1603 = vsel %vm1602, %v1601, %v1158
        %vm1604 = vcmask 883712
        %v1605 = vsel %vm1604, %v1603, %v1162
        %vm1606 = vcmask 916480
        %v1607 = vsel %vm1606, %v1605, %v1166
        %vm1608 = vcmask 949248
        %v1609 = vsel %vm1608, %v1607, %v1170
        %vm1610 = vcmask 982016
        %v1611 = vsel %vm1610, %v1609, %v1174
        %vm1612 = vcmask 1014784
        %v1613 = vsel %vm1612, %v1611, %v1178
        %v1614 = vsel %vm1552, %v459, %v1182
        %v1615 = vsel %vm1554, %v1614, %v1186
        %v1616 = vsel %vm1556, %v1615, %v1190
        %v1617 = vsel %vm1558, %v1616, %v1194
        %v1618 = vsel %vm1560, %v1617, %v1198
        %v1619 = vsel %vm1562, %v1618, %v1202
        %v1620 = vsel %vm1564, %v1619, %v1206
        %v1621 = vsel %vm1566, %v1620, %v1210
        %v1622 = vsel %vm1568, %v1621, %v1214
        %v1623 = vsel %vm1570, %v1622, %v1218
        %v1624 = vsel %vm1572, %v1623, %v1222
        %v1625 = vsel %vm1574, %v1624, %v1226
        %v1626 = vsel %vm1576, %v1625, %v1230
        %v1627 = vsel %vm1578, %v1626, %v1234
        %v1628 = vsel %vm1580, %v1627, %v1238
        %v1629 = vsel %vm1582, %v1628, %v1242
        %v1630 = vsel %vm1584, %v1629, %v1246
        %v1631 = vsel %vm1586, %v1630, %v1250
        %v1632 = vsel %vm1588, %v1631, %v1254
        %v1633 = vsel %vm1590, %v1632, %v1258
        %v1634 = vsel %vm1592, %v1633, %v1262
        %v1635 = vsel %vm1594, %v1634, %v1266
        %v1636 = vsel %vm1596, %v1635, %v1270
        %v1637 = vsel %vm1598, %v1636, %v1274
        %v1638 = vsel %vm1600, %v1637, %v1278
        %v1639 = vsel %vm1602, %v1638, %v1282
        %v1640 = vsel %vm1604, %v1639, %v1286
        %v1641 = vsel %vm1606, %v1640, %v1290
        %v1642 = vsel %vm1608, %v1641, %v1294
        %v1643 = vsel %vm1610, %v1642, %v1298
        %v1644 = vsel %vm1612, %v1643, %v1302
        %v1645 = vsel %vm1552, %v667, %v1306
        %v1646 = vsel %vm1554, %v1645, %v1310
        %v1647 = vsel %vm1556, %v1646, %v1314
        %v1648 = vsel %vm1558, %v1647, %v1318
        %v1649 = vsel %vm1560, %v1648, %v1322
        %v1650 = vsel %vm1562, %v1649, %v1326
        %v1651 = vsel %vm1564, %v1650, %v1330
        %v1652 = vsel %vm1566, %v1651, %v1334
        %v1653 = vsel %vm1568, %v1652, %v1338
        %v1654 = vsel %vm1570, %v1653, %v1342
        %v1655 = vsel %vm1572, %v1654, %v1346
        %v1656 = vsel %vm1574, %v1655, %v1350
        %v1657 = vsel %vm1576, %v1656, %v1354
        %v1658 = vsel %vm1578, %v1657, %v1358
        %v1659 = vsel %vm1580, %v1658, %v1362
        %v1660 = vsel %vm1582, %v1659, %v1366
        %v1661 = vsel %vm1584, %v1660, %v1370
        %v1662 = vsel %vm1586, %v1661, %v1374
        %v1663 = vsel %vm1588, %v1662, %v1378
        %v1664 = vsel %vm1590, %v1663, %v1382
        %v1665 = vsel %vm1592, %v1664, %v1386
        %v1666 = vsel %vm1594, %v1665, %v1390
        %v1667 = vsel %vm1596, %v1666, %v1394
        %v1668 = vsel %vm1598, %v1667, %v1398
        %v1669 = vsel %vm1600, %v1668, %v1402
        %v1670 = vsel %vm1602, %v1669, %v1406
        %v1671 = vsel %vm1604, %v1670, %v1410
        %v1672 = vsel %vm1606, %v1671, %v1414
        %v1673 = vsel %vm1608, %v1672, %v1418
        %v1674 = vsel %vm1610, %v1673, %v1422
        %v1675 = vsel %vm1612, %v1674, %v1426
        %v1676 = vsel %vm1552, %v875, %v1430
        %v1677 = vsel %vm1554, %v1676, %v1434
        %v1678 = vsel %vm1556, %v1677, %v1438
        %v1679 = vsel %vm1558, %v1678, %v1442
        %v1680 = vsel %vm1560, %v1679, %v1446
        %v1681 = vsel %vm1562, %v1680, %v1450
        %v1682 = vsel %vm1564, %v1681, %v1454
        %v1683 = vsel %vm1566, %v1682, %v1458
        %v1684 = vsel %vm1568, %v1683, %v1462
        %v1685 = vsel %vm1570, %v1684, %v1466
        %v1686 = vsel %vm1572, %v1685, %v1470
        %v1687 = vsel %vm1574, %v1686, %v1474
        %v1688 = vsel %vm1576, %v1687, %v1478
        %v1689 = vsel %vm1578, %v1688, %v1482
        %v1690 = vsel %vm1580, %v1689, %v1486
        %v1691 = vsel %vm1582, %v1690, %v1490
        %v1692 = vsel %vm1584, %v1691, %v1494
        %v1693 = vsel %vm1586, %v1692, %v1498
        %v1694 = vsel %vm1588, %v1693, %v1502
        %v1695 = vsel %vm1590, %v1694, %v1506
        %v1696 = vsel %vm1592, %v1695, %v1510
        %v1697 = vsel %vm1594, %v1696, %v1514
        %v1698 = vsel %vm1596, %v1697, %v1518
        %v1699 = vsel %vm1598, %v1698, %v1522
        %v1700 = vsel %vm1600, %v1699, %v1526
        %v1701 = vsel %vm1602, %v1700, %v1530
        %v1702 = vsel %vm1604, %v1701, %v1534
        %v1703 = vsel %vm1606, %v1702, %v1538
        %v1704 = vsel %vm1608, %v1703, %v1542
        %v1705 = vsel %vm1610, %v1704, %v1546
        %v1706 = vsel %vm1612, %v1705, %v1550
        %v1711 = vrot.slane %v1644, 6
        %v1712 = vrot.slane %v1675, 4
        %v1713 = vrot.slane %v1706, 2
        %vm1714 = vcmask 1041408
        %v1715 = vsel %vm1714, %v1613, %v1711
        %vm1716 = vcmask 1045508
        %v1717 = vsel %vm1716, %v1712, %v1713
        %vm1718 = vcmask 1043456
        %v1719 = vsel %vm1718, %v1715, %v1717
        %1721 = vst [vmem:[%s154] sm:$0xff] %v1719
        %s1722 = sand.u32 %s68, 1
        %s1723 = scalar_lea.sflag [#allocation4], %s1722
        %s1724 = sand.u32 %s68, 1
        %s1725 = smul.addr %s1724, 8
        %s1726 = scalar_lea.vmem [#allocation5], %s1725
        // Predicated region
        $region29: #{tpu_custom_call.1} parent=23 // pred_check
          %p1727 = pneg %p78
        $region30: #{tpu_custom_call.1} parent=23 // pred_check_branch
          %1729 = sbr.rel (%p1727) target = $region32
        $region31: #{tpu_custom_call.1} parent=23 // pred_region
          %s1730 = smul.u32 4, %s23
          %1732 = vsyncadd %s1723, 0
          %s1733 = smul.addr %s22, 8
          %s1734 = sadd.s32 %s1730, %s1733
          %s1735 = smul.addr %s1734, 2
          %s1736 = scalar_lea.hbm %s1, %s1735
          %s1738 = sshll.u32 %s1726, 4
          %s1739 = int_to_ptr.vmem [resolvable:$true] %s1738
          %s1740 = sshll.u32 %s1736, 4
          %s1741 = int_to_ptr.hbm [resolvable:$true] %s1740
          %1743 = dma.vmem_to_hbm [thread:$0]  %s1739, 128, %s1741, %s1723
        $region32: #{tpu_custom_call.1} parent=23 // pred_fallthru
          _
      $region24: #{tpu_custom_call.1} parent=5 // pred_fallthru
        _
      %p1744 = scmp.le.s32.totalorder 2, %s13
      // Predicated region
      $region33: #{tpu_custom_call.1} parent=5 // pred_check
        %p1745 = pneg %p1744
      $region34: #{tpu_custom_call.1} parent=5 // pred_check_branch
        %1747 = sbr.rel (%p1745) target = $region36
      $region35: #{tpu_custom_call.1} parent=5 // pred_region
        %s1748 = ssub.s32 %s13, 2
        // Predicated region
        $region37: #{tpu_custom_call.1} parent=35 // pred_check
          %p1749 = pneg %p84
        $region38: #{tpu_custom_call.1} parent=35 // pred_check_branch
          %1751 = sbr.rel (%p1749) target = $region40
        $region39: #{tpu_custom_call.1} parent=35 // pred_region
          %s1752 = sand.u32 %s69, 1
          %s1753 = scalar_lea.sflag [#allocation4], %s1752
          %s1754 = sand.u32 %s69, 1
          %s1755 = smul.addr %s1754, 8
          %s1756 = scalar_lea.vmem [#allocation5], %s1755
          %1758 = dma.done %s1753, 128
        $region40: #{tpu_custom_call.1} parent=35 // pred_fallthru
          _
      $region36: #{tpu_custom_call.1} parent=5 // pred_fallthru
        _
    $region6: #{tpu_custom_call.1} parent=1 // loop_footer
      %s17 = sadd.s32 1, %s13
    $region7: #{tpu_custom_call.1} parent=1 // loop_footer_branch
      %12 = sbr.rel target = $region3
    $region8: #{tpu_custom_call.1} parent=1 // loop_exit
      _
    %1759 = vsyncpa [#allocation3], 1
    %s1760 = scalar_lea.sflag [#allocation3], 1
    %1761 = vsyncpa %s1760, 1
    %1762 = vsyncpa [#allocation4], 1
    %s1763 = scalar_lea.sflag [#allocation4], 1
    %1764 = vsyncpa %s1763, 1

// kernel: tpu_custom_call.1
$region0: #{tpu_custom_call.1}
  #allocation0 [shape = 'u32[]', space=smem, size = 0x4, offset = 0x4, fixed_abs, tag = 'smem constant byte address 0x4 - core index']
  #allocation1 [shape = 'u32[72,128]{1,0:T(1,128)}', space=vmem, size = 0x9000, scoped, tag = 'internal scratch']
  %s0 = inlined_call_operand.hbm [shape: f32[2,4,256], index: 0, kind: input, shape index: {}]
  %s1 = inlined_call_operand.vmem [shape: f32[2,256,4], index: 1, kind: output, shape index: {}]
  %s2 = sld [smem:[#allocation0]]
  $region41: #{tpu_custom_call.1} parent=0
    _
  %s4 = ssub.s32 1, %s2
  %s5 = scalar_select 0, %s4, %s2
  $region1: #{tpu_custom_call.1} parent=0
    #allocation2 [shape = 'u8[8192]{0}', space=vmem, size = 0x2000, scoped, tag = 'input window, operand 0']
    #allocation3 [shape = 's32[2]{0}', space=sflag, size = 0x8, scoped, tag = 'scoped memory for tpu_custom_call.1']
    %6 = vsyncpa [#allocation3], 0
    %s7 = scalar_lea.sflag [#allocation3], 1
    %8 = vsyncpa %s7, 0
    loop: start=0, step=1, limit=4
    $region2: #{tpu_custom_call.1} parent=1 // loop_pre_header
      _
    $region3: #{tpu_custom_call.1} parent=1 // loop_header
      %s10 = sphi 0, %s14
      %p11 = scmp.ge.s32.totalorder %s10, 4
      %s17 = sphi 0, %s29
      %s18 = sphi 0, %s25
      %s19 = sphi 0, %s17
      %s20 = sphi 0, %s18
      %s21 = sphi 0, %s19
      %s22 = sphi 0, %s20
      %s34 = sphi 0, %s36
      %s37 = sphi 0, %s34
      %s38 = sphi 0, %s37
      %s54 = sphi 0, %s38
      %s62 = sphi 0, %s64
      %s65 = sphi 0, %s62
      %s66 = sphi 0, %s65
      %s82 = sphi 0, %s66
    $region4: #{tpu_custom_call.1} parent=1 // loop_header_branch
      %13 = sbr.rel (%p11) target = $region8
    $region5: #{tpu_custom_call.1} parent=1 // loop_body
      %s15 = ssub.s32 %s10, 1
      %s16 = ssub.s32 %s10, 2
      %s23 = sadd.s32 1, %s18
      %p24 = scmp.ge.s32.totalorder %s23, 1
      %s25 = scalar_select %p24, 0, %s23
      %s26 = sadd.s32 1, %s17
      %s27 = scalar_select %p24, %s26, %s17
      %p28 = scmp.ge.s32.totalorder %s27, 2
      %s29 = scalar_select %p28, 0, %s27
      %s30 = ssub.s32 %s17, %s29
      %s31 = ssub.s32 %s18, %s25
      %s32 = sor.u32 %s30, %s31
      %p33 = scmp.eq.s32.totalorder %s32, 0
      %s35 = sadd.s32 %s34, 1
      %s36 = scalar_select %p33, %s34, %s35
      %p39 = pneg %p33
      %p40 = scmp.eq.s32.totalorder %s10, 1
      %p41 = por %p39, %p40
      %p42 = scmp.ne.s32.totalorder %s34, %s37
      %p43 = scmp.eq.s32.totalorder %s10, 0
      %p44 = por %p42, %p43
      %p45 = scmp.ne.s32.totalorder %s34, %s37
      %p46 = scmp.eq.s32.totalorder %s15, 1
      %p47 = por %p45, %p46
      %p48 = scmp.ne.s32.totalorder %s37, %s38
      %p49 = scmp.eq.s32.totalorder %s15, 0
      %p50 = por %p48, %p49
      %p51 = scmp.ne.s32.totalorder %s37, %s38
      %p52 = scmp.eq.s32.totalorder %s16, 1
      %p53 = por %p51, %p52
      %p55 = scmp.ne.s32.totalorder %s38, %s54
      %p56 = scmp.eq.s32.totalorder %s16, 0
      %p57 = por %p55, %p56
      %s58 = ssub.s32 %s17, %s29
      %s59 = ssub.s32 %s18, %s25
      %s60 = sor.u32 %s58, %s59
      %p61 = scmp.eq.s32.totalorder %s60, 0
      %s63 = sadd.s32 %s62, 1
      %s64 = scalar_select %p61, %s62, %s63
      %p67 = pneg %p61
      %p68 = scmp.eq.s32.totalorder %s10, 1
      %p69 = por %p67, %p68
      %p70 = scmp.ne.s32.totalorder %s62, %s65
      %p71 = scmp.eq.s32.totalorder %s10, 0
      %p72 = por %p70, %p71
      %p73 = scmp.ne.s32.totalorder %s62, %s65
      %p74 = scmp.eq.s32.totalorder %s15, 1
      %p75 = por %p73, %p74
      %p76 = scmp.ne.s32.totalorder %s65, %s66
      %p77 = scmp.eq.s32.totalorder %s15, 0
      %p78 = por %p76, %p77
      %p79 = scmp.ne.s32.totalorder %s65, %s66
      %p80 = scmp.eq.s32.totalorder %s16, 1
      %p81 = por %p79, %p80
      %p83 = scmp.ne.s32.totalorder %s66, %s82
      %p84 = scmp.eq.s32.totalorder %s16, 0
      %p85 = por %p83, %p84
      %p86 = scmp.le.s32.totalorder 1, %s10
      %p87 = scmp.lt.s32.totalorder %s10, 3
      %p88 = pnand %p86, %p87
      %p89 = pneg %p88
      // Predicated region
      $region9: #{tpu_custom_call.1} parent=5 // pred_check
        _
      $region10: #{tpu_custom_call.1} parent=5 // pred_check_branch
        %91 = sbr.rel (%p88) target = $region12
      $region11: #{tpu_custom_call.1} parent=5 // pred_region
        %s92 = ssub.s32 %s10, 1
      $region12: #{tpu_custom_call.1} parent=5 // pred_fallthru
        _
      %p93 = scmp.lt.s32.totalorder %s10, 2
      // Predicated region
      $region13: #{tpu_custom_call.1} parent=5 // pred_check
        %p94 = pneg %p93
      $region14: #{tpu_custom_call.1} parent=5 // pred_check_branch
        %96 = sbr.rel (%p94) target = $region16
      $region15: #{tpu_custom_call.1} parent=5 // pred_region
        // Predicated region
        $region17: #{tpu_custom_call.1} parent=15 // pred_check
          %p97 = pneg %p44
        $region18: #{tpu_custom_call.1} parent=15 // pred_check_branch
          %99 = sbr.rel (%p97) target = $region20
        $region19: #{tpu_custom_call.1} parent=15 // pred_region
          %s100 = sand.u32 %s34, 1
          %s101 = scalar_lea.sflag [#allocation3], %s100
          %s102 = sand.u32 %s34, 1
          %s103 = smul.addr %s102, 8
          %s104 = scalar_lea.vmem [#allocation2], %s103
          %s105 = smul.u32 2, %s18
          %107 = vsyncadd %s101, 0
          %s108 = smul.addr %s17, 2
          %s109 = sadd.s32 %s105, %s108
          %s110 = smul.addr %s109, 4
          %s111 = scalar_lea.hbm %s0, %s110
          %s113 = sshll.u32 %s111, 4
          %s114 = int_to_ptr.hbm [resolvable:$true] %s113
          %s115 = sshll.u32 %s104, 4
          %s116 = int_to_ptr.vmem [resolvable:$true] %s115
          %118 = dma.hbm_to_vmem [thread:$0]  %s114, 128, %s116, %s101
        $region20: #{tpu_custom_call.1} parent=15 // pred_fallthru
          _
      $region16: #{tpu_custom_call.1} parent=5 // pred_fallthru
        _
      %p119 = scmp.le.s32.totalorder 1, %s10
      %p120 = scmp.lt.s32.totalorder %s10, 3
      %p121 = pnand %p119, %p120
      %p122 = pneg %p121
      // Predicated region
      $region21: #{tpu_custom_call.1} parent=5 // pred_check
        _
      $region22: #{tpu_custom_call.1} parent=5 // pred_check_branch
        %124 = sbr.rel (%p121) target = $region24
      $region23: #{tpu_custom_call.1} parent=5 // pred_region
        %s125 = ssub.s32 %s10, 1
        %s126 = sand.u32 %s37, 1
        %s127 = scalar_lea.sflag [#allocation3], %s126
        %s128 = sand.u32 %s37, 1
        %s129 = smul.addr %s128, 8
        %s130 = scalar_lea.vmem [#allocation2], %s129
        // Predicated region
        $region25: #{tpu_custom_call.1} parent=23 // pred_check
          %p131 = pneg %p50
        $region26: #{tpu_custom_call.1} parent=23 // pred_check_branch
          %133 = sbr.rel (%p131) target = $region28
        $region27: #{tpu_custom_call.1} parent=23 // pred_region
          %135 = dma.done %s127, 128
        $region28: #{tpu_custom_call.1} parent=23 // pred_fallthru
          _
        %s136 = sand.u32 %s37, 1
        %s137 = scalar_lea.sflag [#allocation3], %s136
        %s138 = sand.u32 %s37, 1
        %s139 = smul.addr %s138, 8
        %s140 = scalar_lea.vmem [#allocation2], %s139
        %p141 = pneg %p50
        %p142 = pneg %p47
        %p143 = pneg %p78
        %p144 = pneg %p75
        %s145 = smul.u32 32, %s20
        %p146 = scmp.lt.s32.totalorder %s19, 1
        %s147 = scalar_select %p146, %s19, 1
        %p148 = scmp.lt.s32.totalorder %s145, 31
        %s149 = scalar_select %p148, %s145, 31
        %s150 = smul.addr %s147, 32
        %s151 = sadd.s32 %s149, %s150
        %s152 = smul.addr %s151, 8
        %s153 = scalar_lea.vmem %s1, %s152
        %s154 = smul.u32 2, %s20
        %s155 = smul.u32 32, %s20
        %p156 = scmp.lt.s32.totalorder %s19, 1
        %s157 = scalar_select %p156, %s19, 1
        %p158 = scmp.lt.s32.totalorder %s155, 31
        %s159 = scalar_select %p158, %s155, 31
        %s160 = smul.addr %s157, 32
        %s161 = sadd.s32 %s159, %s160
        %s162 = smul.addr %s161, 8
        %s163 = scalar_lea.vmem %s1, %s162
        %s164 = smul.u32 32, %s20
        %v165 = vld [vmem:[%s130] sm:$0xff]
        %167 = vst [vmem:[#allocation1] ss:$2 sm:$0xff] %v165
        %v168 = vld.sshfl [vmem:[#allocation1] sm:$0xff pattern:$0x75316420]
        %v169 = vld.sshfl [vmem:[#allocation1 + $0x8] sm:$0xff pattern:$0x75316420]
        %172 = vxpose.xlu0.b32.start [1/16] %v168, 128
        %173 = vxpose.xlu0.b32.cont [2/16] 0.0, 128
        %174 = vxpose.xlu0.b32.cont [3/16] 0.0, 128
        %175 = vxpose.xlu0.b32.cont [4/16] 0.0, 128
        %176 = vxpose.xlu0.b32.cont [5/16] 0.0, 128
        %177 = vxpose.xlu0.b32.cont [6/16] 0.0, 128
        %178 = vxpose.xlu0.b32.cont [7/16] 0.0, 128
        %179 = vxpose.xlu0.b32.cont [8/16] 0.0, 128
        %180 = vxpose.xlu0.b32.cont [9/16] 0.0, 128
        %181 = vxpose.xlu0.b32.cont [10/16] 0.0, 128
        %182 = vxpose.xlu0.b32.cont [11/16] 0.0, 128
        %183 = vxpose.xlu0.b32.cont [12/16] 0.0, 128
        %184 = vxpose.xlu0.b32.cont [13/16] 0.0, 128
        %185 = vxpose.xlu0.b32.cont [14/16] 0.0, 128
        %186 = vxpose.xlu0.b32.cont [15/16] 0.0, 128
        %187 = vxpose.xlu0.b32.end [16/16] 0.0, 128
        %v188 = vpop.trf.xlu0
        %v189 = vpop.trf.xlu0
        %v190 = vpop.trf.xlu0
        %v191 = vpop.trf.xlu0
        %v192 = vpop.trf.xlu0
        %v193 = vpop.trf.xlu0
        %v194 = vpop.trf.xlu0
        %v195 = vpop.trf.xlu0
        %v196 = vpop.trf.xlu0
        %v197 = vpop.trf.xlu0
        %v198 = vpop.trf.xlu0
        %v199 = vpop.trf.xlu0
        %v200 = vpop.trf.xlu0
        %v201 = vpop.trf.xlu0
        %v202 = vpop.trf.xlu0
        %v203 = vpop.trf.xlu0
        %204 = vxpose.xlu0.b32.start [1/16] %v169, 128
        %205 = vxpose.xlu0.b32.cont [2/16] 0.0, 128
        %206 = vxpose.xlu0.b32.cont [3/16] 0.0, 128
        %207 = vxpose.xlu0.b32.cont [4/16] 0.0, 128
        %208 = vxpose.xlu0.b32.cont [5/16] 0.0, 128
        %209 = vxpose.xlu0.b32.cont [6/16] 0.0, 128
        %210 = vxpose.xlu0.b32.cont [7/16] 0.0, 128
        %211 = vxpose.xlu0.b32.cont [8/16] 0.0, 128
        %212 = vxpose.xlu0.b32.cont [9/16] 0.0, 128
        %213 = vxpose.xlu0.b32.cont [10/16] 0.0, 128
        %214 = vxpose.xlu0.b32.cont [11/16] 0.0, 128
        %215 = vxpose.xlu0.b32.cont [12/16] 0.0, 128
        %216 = vxpose.xlu0.b32.cont [13/16] 0.0, 128
        %217 = vxpose.xlu0.b32.cont [14/16] 0.0, 128
        %218 = vxpose.xlu0.b32.cont [15/16] 0.0, 128
        %219 = vxpose.xlu0.b32.end [16/16] 0.0, 128
        %v220 = vpop.trf.xlu0
        %v221 = vpop.trf.xlu0
        %v222 = vpop.trf.xlu0
        %v223 = vpop.trf.xlu0
        %v224 = vpop.trf.xlu0
        %v225 = vpop.trf.xlu0
        %v226 = vpop.trf.xlu0
        %v227 = vpop.trf.xlu0
        %v228 = vpop.trf.xlu0
        %v229 = vpop.trf.xlu0
        %v230 = vpop.trf.xlu0
        %v231 = vpop.trf.xlu0
        %v232 = vpop.trf.xlu0
        %v233 = vpop.trf.xlu0
        %v234 = vpop.trf.xlu0
        %v235 = vpop.trf.xlu0
        %vm236 = vcmask 31744
        %237 = vst.msk [vmem:[%s163] sm:$0xff] %vm236, %v188
        %238 = vst.msk [vmem:[%s163 + $0x8] sm:$0xff] %vm236, %v189
        %239 = vst.msk [vmem:[%s163 + $0x10] sm:$0xff] %vm236, %v190
        %240 = vst.msk [vmem:[%s163 + $0x18] sm:$0xff] %vm236, %v191
        %241 = vst.msk [vmem:[%s163 + $0x20] sm:$0xff] %vm236, %v192
        %242 = vst.msk [vmem:[%s163 + $0x28] sm:$0xff] %vm236, %v193
        %243 = vst.msk [vmem:[%s163 + $0x30] sm:$0xff] %vm236, %v194
        %244 = vst.msk [vmem:[%s163 + $0x38] sm:$0xff] %vm236, %v195
        %245 = vst.msk [vmem:[%s163 + $0x40] sm:$0xff] %vm236, %v196
        %246 = vst.msk [vmem:[%s163 + $0x48] sm:$0xff] %vm236, %v197
        %247 = vst.msk [vmem:[%s163 + $0x50] sm:$0xff] %vm236, %v198
        %248 = vst.msk [vmem:[%s163 + $0x58] sm:$0xff] %vm236, %v199
        %249 = vst.msk [vmem:[%s163 + $0x60] sm:$0xff] %vm236, %v200
        %250 = vst.msk [vmem:[%s163 + $0x68] sm:$0xff] %vm236, %v201
        %251 = vst.msk [vmem:[%s163 + $0x70] sm:$0xff] %vm236, %v202
        %252 = vst.msk [vmem:[%s163 + $0x78] sm:$0xff] %vm236, %v203
        %253 = vst.msk [vmem:[%s163 + $0x80] sm:$0xff] %vm236, %v220
        %254 = vst.msk [vmem:[%s163 + $0x88] sm:$0xff] %vm236, %v221
        %255 = vst.msk [vmem:[%s163 + $0x90] sm:$0xff] %vm236, %v222
        %256 = vst.msk [vmem:[%s163 + $0x98] sm:$0xff] %vm236, %v223
        %257 = vst.msk [vmem:[%s163 + $0xa0] sm:$0xff] %vm236, %v224
        %258 = vst.msk [vmem:[%s163 + $0xa8] sm:$0xff] %vm236, %v225
        %259 = vst.msk [vmem:[%s163 + $0xb0] sm:$0xff] %vm236, %v226
        %260 = vst.msk [vmem:[%s163 + $0xb8] sm:$0xff] %vm236, %v227
        %261 = vst.msk [vmem:[%s163 + $0xc0] sm:$0xff] %vm236, %v228
        %262 = vst.msk [vmem:[%s163 + $0xc8] sm:$0xff] %vm236, %v229
        %263 = vst.msk [vmem:[%s163 + $0xd0] sm:$0xff] %vm236, %v230
        %264 = vst.msk [vmem:[%s163 + $0xd8] sm:$0xff] %vm236, %v231
        %265 = vst.msk [vmem:[%s163 + $0xe0] sm:$0xff] %vm236, %v232
        %266 = vst.msk [vmem:[%s163 + $0xe8] sm:$0xff] %vm236, %v233
        %267 = vst.msk [vmem:[%s163 + $0xf0] sm:$0xff] %vm236, %v234
        %268 = vst.msk [vmem:[%s163 + $0xf8] sm:$0xff] %vm236, %v235
        %s269 = smul.u32 32, %s20
        %p270 = scmp.lt.s32.totalorder %s19, 1
        %s271 = scalar_select %p270, %s19, 1
        %p272 = scmp.lt.s32.totalorder %s269, 31
        %s273 = scalar_select %p272, %s269, 31
        %s274 = smul.addr %s271, 32
        %s275 = sadd.s32 %s273, %s274
        %s276 = smul.addr %s275, 8
        %s277 = scalar_lea.vmem %s1, %s276
        // Predicated region
        $region29: #{tpu_custom_call.1} parent=23 // pred_check
          %p278 = pneg %p75
        $region30: #{tpu_custom_call.1} parent=23 // pred_check_branch
          %280 = sbr.rel (%p278) target = $region32
        $region31: #{tpu_custom_call.1} parent=23 // pred_region
          %s281 = smul.u32 32, %s20
        $region32: #{tpu_custom_call.1} parent=23 // pred_fallthru
          _
      $region24: #{tpu_custom_call.1} parent=5 // pred_fallthru
        _
      %p282 = scmp.le.s32.totalorder 2, %s10
      // Predicated region
      $region33: #{tpu_custom_call.1} parent=5 // pred_check
        %p283 = pneg %p282
      $region34: #{tpu_custom_call.1} parent=5 // pred_check_branch
        %285 = sbr.rel (%p283) target = $region36
      $region35: #{tpu_custom_call.1} parent=5 // pred_region
        %s286 = ssub.s32 %s10, 2
        // Predicated region
        $region37: #{tpu_custom_call.1} parent=35 // pred_check
          %p287 = pneg %p81
        $region38: #{tpu_custom_call.1} parent=35 // pred_check_branch
          %289 = sbr.rel (%p287) target = $region40
        $region39: #{tpu_custom_call.1} parent=35 // pred_region
          %s290 = smul.u32 32, %s22
          %p291 = scmp.lt.s32.totalorder %s21, 1
          %s292 = scalar_select %p291, %s21, 1
          %p293 = scmp.lt.s32.totalorder %s290, 31
          %s294 = scalar_select %p293, %s290, 31
          %s295 = smul.addr %s292, 32
          %s296 = sadd.s32 %s294, %s295
          %s297 = smul.addr %s296, 8
          %s298 = scalar_lea.vmem %s1, %s297
        $region40: #{tpu_custom_call.1} parent=35 // pred_fallthru
          _
      $region36: #{tpu_custom_call.1} parent=5 // pred_fallthru
        _
    $region6: #{tpu_custom_call.1} parent=1 // loop_footer
      %s14 = sadd.s32 1, %s10
    $region7: #{tpu_custom_call.1} parent=1 // loop_footer_branch
      %9 = sbr.rel target = $region3
    $region8: #{tpu_custom_call.1} parent=1 // loop_exit
      _
    %299 = vsyncpa [#allocation3], 1
    %s300 = scalar_lea.sflag [#allocation3], 1
    %301 = vsyncpa %s300, 1

</llo_original>
